<compile_context>
chip_gen: v5e
topology: v5e:2x2
jax: 0.10.0
libtpu: 0.0.40
codegen_flags: <defaults>
</compile_context>

<pallas_src>
import math

import jax
import jax.numpy as jnp
from jax.experimental import pallas as pl
from jax.experimental.pallas import tpu as pltpu

# ----- small, ALBERT-consistent config -----
B = 2           # batch
S = 8           # sequence length
H = 32          # hidden_size
NH = 4          # num_attention_heads
HD = H // NH    # attention_head_size
I = 64          # intermediate_size
L = 2           # inner_group_num (number of AlbertLayers in the group)
EPS = 1e-12     # layer_norm_eps
M = B * S       # flattened token count


def _gelu_new(x):
    # ACT2FN["gelu_new"] (tanh approximation) -- ALBERT default activation.
    return 0.5 * x * (1.0 + jnp.tanh(
        math.sqrt(2.0 / math.pi) * (x + 0.044715 * x * x * x)))


def _layernorm(x, g, b):
    mu = jnp.mean(x, axis=-1, keepdims=True)
    var = jnp.mean((x - mu) ** 2, axis=-1, keepdims=True)
    return (x - mu) * jax.lax.rsqrt(var + EPS) * g + b


def _make_kernel(has_mask):
    """Build the layer-group kernel; the mask input exists only if has_mask."""

    def kernel(*refs):
        if has_mask:
            (x_ref, mask_ref, wqkvh_ref, wo_ref, wf_ref, wfo_ref,
             bqkvh_ref, bf_ref, vec_ref, out_ref) = refs
        else:
            (x_ref, wqkvh_ref, wo_ref, wf_ref, wfo_ref,
             bqkvh_ref, bf_ref, vec_ref, out_ref) = refs
            mask_ref = None

        h = x_ref[...]                                   # (M, H) f32 running hidden state

        if has_mask:
            # (B,S,S) -> (NH*B,S,S); merged batch index is h*B + b (head-major).
            mask_all = jnp.tile(mask_ref[...], (NH, 1, 1))

        # ---- static in-kernel loop over the L AlbertLayers of the group ----
        for layer in range(L):
            wqkvh = wqkvh_ref[layer]                     # (NH, H, 3*HD) bf16 (Q pre-scaled)
            bqkvh = bqkvh_ref[layer]                     # (NH, 3*HD)    f32  (Q bias pre-scaled)
            wo = wo_ref[layer]                           # (H, H)  bf16
            wf = wf_ref[layer]                           # (H, I)  bf16
            wfo = wfo_ref[layer]                         # (I, H)  bf16
            bf_b = bf_ref[layer]                         # (1, I)  f32
            vecs = vec_ref[layer]                        # (6, H)  f32: bo,g1,b1,bfo,g2,b2
            bo, g1, b1 = vecs[0:1], vecs[1:2], vecs[2:3]
            bfo, g2, b2 = vecs[3:4], vecs[4:5], vecs[5:6]

            # ---- per-(head, batch) fused Q/K/V projection (single batched einsum) ----
            hb = h.astype(jnp.bfloat16).reshape(B, S, H)
            hb = jnp.broadcast_to(hb[None], (NH, B, S, H)).reshape(NH * B, S, H)
            wqb = jnp.broadcast_to(wqkvh[:, None], (NH, B, H, 3 * HD)
                                   ).reshape(NH * B, H, 3 * HD)
            bqb = jnp.broadcast_to(bqkvh[:, None, None, :], (NH, B, 1, 3 * HD)
                                   ).reshape(NH * B, 1, 3 * HD)
            qkv = jnp.einsum('bsd,bdk->bsk', hb, wqb,
                             preferred_element_type=jnp.float32) + bqb   # (NH*B, S, 3HD)

            q = qkv[..., 0:HD].astype(jnp.bfloat16)
            k = qkv[..., HD:2 * HD].astype(jnp.bfloat16)
            v = qkv[..., 2 * HD:3 * HD].astype(jnp.bfloat16)

            # ---- attention (scale already folded into Q) ----
            s = jnp.einsum('bqd,bkd->bqk', q, k,
                           preferred_element_type=jnp.float32)           # (NH*B, S, S)
            if has_mask:
                s = s + mask_all
            s = s - jnp.max(s, axis=-1, keepdims=True)
            p = jnp.exp(s)
            p = p * pl.reciprocal(jnp.sum(p, axis=-1, keepdims=True), approx=True)
            ctx = jnp.einsum('bqk,bkd->bqd', p.astype(jnp.bfloat16), v,
                             preferred_element_type=jnp.float32)         # (NH*B, S, HD)

            # ---- heads back to lanes: one concat, then a single K=H Wo matmul ----
            ctx4 = ctx.reshape(NH, B, S, HD)
            ctx_full = jnp.concatenate(
                [ctx4[hh].reshape(M, HD) for hh in range(NH)], axis=-1)  # (M, H) f32
            proj = jnp.dot(ctx_full.astype(jnp.bfloat16), wo,
                           preferred_element_type=jnp.float32) + bo      # (M, H)

            # ---- residual + LayerNorm (attention block) ----
            attn_out = _layernorm(h + proj, g1, b1)

            # ---- FFN (gelu_new) + residual + LayerNorm ----
            h1 = jnp.dot(attn_out.astype(jnp.bfloat16), wf,
                         preferred_element_type=jnp.float32) + bf_b
            h1 = _gelu_new(h1)
            h2 = jnp.dot(h1.astype(jnp.bfloat16), wfo,
                         preferred_element_type=jnp.float32) + bfo
            h = _layernorm(h2 + attn_out, g2, b2)

        out_ref[...] = h

    return kernel


def albert_layer_group(x, params, mask=None):
    """x: (B, S, H) f32; mask: optional (B, S, S) additive mask; params: stacked."""
    wqkvh, bqkvh, wo_s, wf_s, bf_s, wfo_s, vecs = params
    x2 = x.reshape(M, H)

    inputs = (x2,)
    if mask is not None:
        inputs = inputs + (mask,)
    inputs = inputs + (wqkvh, wo_s, wf_s, wfo_s, bqkvh, bf_s, vecs)

    vmem_spec = pl.BlockSpec(memory_space=pltpu.MemorySpace.VMEM)
    out = pl.pallas_call(
        _make_kernel(mask is not None),
        out_shape=jax.ShapeDtypeStruct((M, H), jnp.float32),
        in_specs=[vmem_spec] * len(inputs),
        out_specs=vmem_spec,
    )(*inputs)
    return out.reshape(B, S, H)


# ----------------- pure-JAX f32 reference for verification -----------------
def _albert_layer_ref(x, mask, wq, bq, wk, bk, wv, bv, wo, bo, g1, b1,
                      wf, bf, wfo, bfo, g2, b2):
    q = x @ wq + bq
    k = x @ wk + bk
    v = x @ wv + bv

    def split(t):   # (B,S,H) -> (B,NH,S,HD)
        return t.reshape(B, S, NH, HD).transpose(0, 2, 1, 3)

    qh, kh, vh = split(q), split(k), split(v)
    scores = jnp.einsum('bnqd,bnkd->bnqk', qh, kh) / math.sqrt(HD)
    if mask is not None:
        scores = scores + mask[:, None, :, :]
    probs = jax.nn.softmax(scores, axis=-1)
    ctx = jnp.einsum('bnqk,bnkd->bnqd', probs, vh)
    ctx = ctx.transpose(0, 2, 1, 3).reshape(B, S, H)
    attn_out = _layernorm(x + ctx @ wo + bo, g1, b1)
    h1 = _gelu_new(attn_out @ wf + bf)
    h2 = h1 @ wfo + bfo
    return _layernorm(h2 + attn_out, g2, b2)


def albert_layer_group_ref(x, mask, layer_params):
    h = x
    for p in layer_params:
        h = _albert_layer_ref(h, mask, *p)
    return h


if __name__ == "__main__":
    key = jax.random.PRNGKey(0)
    kit = iter(jax.random.split(key, 64))

    def rnd(k, shape, scale=0.02):
        return (scale * jax.random.normal(k, shape)).astype(jnp.float32)

    x = jax.random.normal(next(kit), (B, S, H), dtype=jnp.float32)
    mask = None   # attention_mask=None (module default); no mask tensor / DMA at all

    # per-layer parameters (torch nn.Linear weights already transposed to (in,out))
    layer_params = []
    for _ in range(L):
        wq, bq = rnd(next(kit), (H, H)), rnd(next(kit), (1, H))
        wk, bk = rnd(next(kit), (H, H)), rnd(next(kit), (1, H))
        wv, bv = rnd(next(kit), (H, H)), rnd(next(kit), (1, H))
        wo_, bo = rnd(next(kit), (H, H)), rnd(next(kit), (1, H))
        g1 = 1.0 + rnd(next(kit), (1, H))
        b1 = rnd(next(kit), (1, H))
        wf_, bf_ = rnd(next(kit), (H, I)), rnd(next(kit), (1, I))
        wfo_, bfo = rnd(next(kit), (I, H)), rnd(next(kit), (1, H))
        g2 = 1.0 + rnd(next(kit), (1, H))
        b2 = rnd(next(kit), (1, H))
        layer_params.append((wq, bq, wk, bk, wv, bv, wo_, bo, g1, b1,
                             wf_, bf_, wfo_, bfo, g2, b2))

    # ---- pack / stack for the kernel ----
    scale = 1.0 / math.sqrt(HD)

    def pack_qkv_heads(wq, wk, wv):        # (NH, H, 3*HD), Q columns pre-scaled
        return jnp.stack([jnp.concatenate(
            [wq[:, h * HD:(h + 1) * HD] * scale,
             wk[:, h * HD:(h + 1) * HD],
             wv[:, h * HD:(h + 1) * HD]], axis=-1) for h in range(NH)])

    def pack_qkv_bias_heads(bq, bk, bv):   # (NH, 3*HD), Q bias pre-scaled
        return jnp.stack([jnp.concatenate(
            [bq[0, h * HD:(h + 1) * HD] * scale,
             bk[0, h * HD:(h + 1) * HD],
             bv[0, h * HD:(h + 1) * HD]], axis=-1) for h in range(NH)])

    wqkvh = jnp.stack([pack_qkv_heads(p[0], p[2], p[4])
                       for p in layer_params]).astype(jnp.bfloat16)      # (L,NH,H,3HD)
    bqkvh = jnp.stack([pack_qkv_bias_heads(p[1], p[3], p[5])
                       for p in layer_params])                           # (L,NH,3HD) f32
    wo_s = jnp.stack([p[6] for p in layer_params]).astype(jnp.bfloat16)  # (L,H,H)
    wf_s = jnp.stack([p[10] for p in layer_params]).astype(jnp.bfloat16) # (L,H,I)
    bf_s = jnp.stack([p[11] for p in layer_params])                      # (L,1,I) f32
    wfo_s = jnp.stack([p[12] for p in layer_params]).astype(jnp.bfloat16)# (L,I,H)
    vecs = jnp.stack([jnp.concatenate(
        [p[7], p[8], p[9], p[13], p[14], p[15]], axis=0)
        for p in layer_params])                                          # (L,6,H) f32
    params_packed = (wqkvh, bqkvh, wo_s, wf_s, bf_s, wfo_s, vecs)

    out = albert_layer_group(x, params_packed, mask=mask)
    out = jax.block_until_ready(out)

    ref = albert_layer_group_ref(x, mask, layer_params)
    assert out.shape == (B, S, H)
    # bf16 MXU operands + approx-reciprocal softmax -> compare at 2e-3.
    assert jnp.allclose(out, ref, atol=2e-3, rtol=2e-3), "mismatch vs reference"

    # TODO(synk): dropout layers are identity (eval mode); head_mask is treated
    # as None; only the use_decomposition=False (plain nn.Linear) path and the
    # output_attentions/output_hidden_states=False outputs are implemented.
    print("KERNEL_OK")
</pallas_src>

<mosaic_0001>
module attributes {stable_mosaic.version = 11 : i64} {
  func.func @kernel(%arg0: memref<16x32xf32, #tpu.memory_space<vmem>>, %arg1: memref<2x4x32x24xbf16, #tpu.memory_space<vmem>>, %arg2: memref<2x32x32xbf16, #tpu.memory_space<vmem>>, %arg3: memref<2x32x64xbf16, #tpu.memory_space<vmem>>, %arg4: memref<2x64x32xbf16, #tpu.memory_space<vmem>>, %arg5: memref<2x4x24xf32, #tpu.memory_space<vmem>>, %arg6: memref<2x1x64xf32, #tpu.memory_space<vmem>>, %arg7: memref<2x6x32xf32, #tpu.memory_space<vmem>>, %arg8: memref<16x32xf32, #tpu.memory_space<vmem>>) attributes {dimension_semantics = [], scalar_prefetch = 0 : i64, scratch_operands = 0 : i64, tpu.core_type = #tpu.core_type<tc>} {
    %c0 = arith.constant 0 : index
    %c0_0 = arith.constant 0 : index
    %0 = vector.load %arg0[%c0, %c0_0] : memref<16x32xf32, #tpu.memory_space<vmem>>, vector<16x32xf32>
    %c0_1 = arith.constant 0 : index
    %c0_2 = arith.constant 0 : index
    %c0_3 = arith.constant 0 : index
    %c0_4 = arith.constant 0 : index
    %1 = vector.load %arg1[%c0_1, %c0_2, %c0_3, %c0_4] : memref<2x4x32x24xbf16, #tpu.memory_space<vmem>>, vector<1x4x32x24xbf16>
    %2 = vector.shape_cast %1 : vector<1x4x32x24xbf16> to vector<4x32x24xbf16>
    %c0_5 = arith.constant 0 : index
    %c0_6 = arith.constant 0 : index
    %c0_7 = arith.constant 0 : index
    %3 = vector.load %arg5[%c0_5, %c0_6, %c0_7] : memref<2x4x24xf32, #tpu.memory_space<vmem>>, vector<1x4x24xf32>
    %4 = vector.shape_cast %3 : vector<1x4x24xf32> to vector<4x24xf32>
    %c0_8 = arith.constant 0 : index
    %c0_9 = arith.constant 0 : index
    %c0_10 = arith.constant 0 : index
    %5 = vector.load %arg2[%c0_8, %c0_9, %c0_10] : memref<2x32x32xbf16, #tpu.memory_space<vmem>>, vector<1x32x32xbf16>
    %6 = vector.shape_cast %5 : vector<1x32x32xbf16> to vector<32x32xbf16>
    %c0_11 = arith.constant 0 : index
    %c0_12 = arith.constant 0 : index
    %c0_13 = arith.constant 0 : index
    %7 = vector.load %arg3[%c0_11, %c0_12, %c0_13] : memref<2x32x64xbf16, #tpu.memory_space<vmem>>, vector<1x32x64xbf16>
    %8 = vector.shape_cast %7 : vector<1x32x64xbf16> to vector<32x64xbf16>
    %c0_14 = arith.constant 0 : index
    %c0_15 = arith.constant 0 : index
    %c0_16 = arith.constant 0 : index
    %9 = vector.load %arg4[%c0_14, %c0_15, %c0_16] : memref<2x64x32xbf16, #tpu.memory_space<vmem>>, vector<1x64x32xbf16>
    %10 = vector.shape_cast %9 : vector<1x64x32xbf16> to vector<64x32xbf16>
    %c0_17 = arith.constant 0 : index
    %c0_18 = arith.constant 0 : index
    %c0_19 = arith.constant 0 : index
    %11 = vector.load %arg6[%c0_17, %c0_18, %c0_19] : memref<2x1x64xf32, #tpu.memory_space<vmem>>, vector<1x1x64xf32>
    %12 = vector.shape_cast %11 : vector<1x1x64xf32> to vector<1x64xf32>
    %c0_20 = arith.constant 0 : index
    %c0_21 = arith.constant 0 : index
    %c0_22 = arith.constant 0 : index
    %13 = vector.load %arg7[%c0_20, %c0_21, %c0_22] : memref<2x6x32xf32, #tpu.memory_space<vmem>>, vector<1x6x32xf32>
    %14 = vector.shape_cast %13 : vector<1x6x32xf32> to vector<6x32xf32>
    %15 = vector.extract_strided_slice %14 {offsets = [0, 0], sizes = [1, 32], strides = [1, 1]} : vector<6x32xf32> to vector<1x32xf32>
    %16 = vector.extract_strided_slice %14 {offsets = [1, 0], sizes = [1, 32], strides = [1, 1]} : vector<6x32xf32> to vector<1x32xf32>
    %17 = vector.extract_strided_slice %14 {offsets = [2, 0], sizes = [1, 32], strides = [1, 1]} : vector<6x32xf32> to vector<1x32xf32>
    %18 = vector.extract_strided_slice %14 {offsets = [3, 0], sizes = [1, 32], strides = [1, 1]} : vector<6x32xf32> to vector<1x32xf32>
    %19 = vector.extract_strided_slice %14 {offsets = [4, 0], sizes = [1, 32], strides = [1, 1]} : vector<6x32xf32> to vector<1x32xf32>
    %20 = vector.extract_strided_slice %14 {offsets = [5, 0], sizes = [1, 32], strides = [1, 1]} : vector<6x32xf32> to vector<1x32xf32>
    %21 = arith.truncf %0 : vector<16x32xf32> to vector<16x32xbf16>
    %22 = vector.shape_cast %21 : vector<16x32xbf16> to vector<2x8x32xbf16>
    %23 = vector.shape_cast %22 : vector<2x8x32xbf16> to vector<1x2x8x32xbf16>
    %24 = vector.shape_cast %23 : vector<1x2x8x32xbf16> to vector<1x2x8x32xbf16>
    %25 = vector.broadcast %24 : vector<1x2x8x32xbf16> to vector<4x2x8x32xbf16>
    %26 = vector.shape_cast %25 : vector<4x2x8x32xbf16> to vector<8x8x32xbf16>
    %27 = vector.shape_cast %2 : vector<4x32x24xbf16> to vector<4x1x32x24xbf16>
    %28 = vector.shape_cast %27 : vector<4x1x32x24xbf16> to vector<4x1x32x24xbf16>
    %29 = vector.broadcast %28 : vector<4x1x32x24xbf16> to vector<4x2x32x24xbf16>
    %30 = vector.shape_cast %29 : vector<4x2x32x24xbf16> to vector<8x32x24xbf16>
    %31 = vector.shape_cast %4 : vector<4x24xf32> to vector<4x1x1x24xf32>
    %32 = vector.shape_cast %31 : vector<4x1x1x24xf32> to vector<4x1x1x24xf32>
    %33 = vector.broadcast %32 : vector<4x1x1x24xf32> to vector<4x2x1x24xf32>
    %34 = vector.shape_cast %33 : vector<4x2x1x24xf32> to vector<8x1x24xf32>
    "tpu.trace_start"() <{level = 10 : i32, message = "bsd,bdk->bsk"}> : () -> ()
    %cst = arith.constant dense<0.000000e+00> : vector<8x8x24xf32>
    %35 = tpu.matmul %26, %30, %cst {dimension_numbers = #tpu.dot_dimension_numbers<[2], [1], [1], [2], [0, 0, 0, 1, 1, 2], [0], [0]>} : vector<8x8x32xbf16>, vector<8x32x24xbf16>, vector<8x8x24xf32> -> vector<8x8x24xf32>
    "tpu.trace_stop"() : () -> ()
    %36 = vector.broadcast %34 : vector<8x1x24xf32> to vector<8x8x24xf32>
    %37 = arith.addf %35, %36 : vector<8x8x24xf32>
    %38 = vector.extract_strided_slice %37 {offsets = [0, 0, 0], sizes = [8, 8, 8], strides = [1, 1, 1]} : vector<8x8x24xf32> to vector<8x8x8xf32>
    %39 = arith.truncf %38 : vector<8x8x8xf32> to vector<8x8x8xbf16>
    %40 = vector.extract_strided_slice %37 {offsets = [0, 0, 8], sizes = [8, 8, 8], strides = [1, 1, 1]} : vector<8x8x24xf32> to vector<8x8x8xf32>
    %41 = arith.truncf %40 : vector<8x8x8xf32> to vector<8x8x8xbf16>
    %42 = vector.extract_strided_slice %37 {offsets = [0, 0, 16], sizes = [8, 8, 8], strides = [1, 1, 1]} : vector<8x8x24xf32> to vector<8x8x8xf32>
    %43 = arith.truncf %42 : vector<8x8x8xf32> to vector<8x8x8xbf16>
    "tpu.trace_start"() <{level = 10 : i32, message = "bqd,bkd->bqk"}> : () -> ()
    %cst_23 = arith.constant dense<0.000000e+00> : vector<8x8x8xf32>
    %44 = tpu.matmul %39, %41, %cst_23 {dimension_numbers = #tpu.dot_dimension_numbers<[2], [2], [1], [1], [0, 0, 0, 1, 1, 1], [0], [0]>} : vector<8x8x8xbf16>, vector<8x8x8xbf16>, vector<8x8x8xf32> -> vector<8x8x8xf32>
    "tpu.trace_stop"() : () -> ()
    %cst_24 = arith.constant dense<0xFF800000> : vector<8x8xf32>
    %45 = vector.multi_reduction <maximumf>, %44, %cst_24 [2] : vector<8x8x8xf32> to vector<8x8xf32>
    %46 = vector.shape_cast %45 : vector<8x8xf32> to vector<8x8x1xf32>
    %47 = vector.broadcast %46 : vector<8x8x1xf32> to vector<8x8x8xf32>
    %48 = arith.subf %44, %47 : vector<8x8x8xf32>
    %49 = math.exp %48 : vector<8x8x8xf32>
    %cst_25 = arith.constant dense<0.000000e+00> : vector<8x8xf32>
    %50 = vector.multi_reduction <add>, %49, %cst_25 [2] : vector<8x8x8xf32> to vector<8x8xf32>
    %51 = vector.shape_cast %50 : vector<8x8xf32> to vector<8x8x1xf32>
    %52 = tpu.reciprocal %51 {approx = true} : vector<8x8x1xf32> -> vector<8x8x1xf32>
    %53 = vector.broadcast %52 : vector<8x8x1xf32> to vector<8x8x8xf32>
    %54 = arith.mulf %49, %53 : vector<8x8x8xf32>
    %55 = arith.truncf %54 : vector<8x8x8xf32> to vector<8x8x8xbf16>
    "tpu.trace_start"() <{level = 10 : i32, message = "bqk,bkd->bqd"}> : () -> ()
    %cst_26 = arith.constant dense<0.000000e+00> : vector<8x8x8xf32>
    %56 = tpu.matmul %55, %43, %cst_26 {dimension_numbers = #tpu.dot_dimension_numbers<[2], [1], [1], [2], [0, 0, 0, 1, 1, 2], [0], [0]>} : vector<8x8x8xbf16>, vector<8x8x8xbf16>, vector<8x8x8xf32> -> vector<8x8x8xf32>
    "tpu.trace_stop"() : () -> ()
    %57 = vector.shape_cast %56 : vector<8x8x8xf32> to vector<4x2x8x8xf32>
    %58 = vector.extract_strided_slice %57 {offsets = [0, 0, 0, 0], sizes = [1, 2, 8, 8], strides = [1, 1, 1, 1]} : vector<4x2x8x8xf32> to vector<1x2x8x8xf32>
    %59 = vector.shape_cast %58 : vector<1x2x8x8xf32> to vector<2x8x8xf32>
    %60 = vector.shape_cast %59 : vector<2x8x8xf32> to vector<16x8xf32>
    %61 = vector.extract_strided_slice %57 {offsets = [1, 0, 0, 0], sizes = [1, 2, 8, 8], strides = [1, 1, 1, 1]} : vector<4x2x8x8xf32> to vector<1x2x8x8xf32>
    %62 = vector.shape_cast %61 : vector<1x2x8x8xf32> to vector<2x8x8xf32>
    %63 = vector.shape_cast %62 : vector<2x8x8xf32> to vector<16x8xf32>
    %64 = vector.extract_strided_slice %57 {offsets = [2, 0, 0, 0], sizes = [1, 2, 8, 8], strides = [1, 1, 1, 1]} : vector<4x2x8x8xf32> to vector<1x2x8x8xf32>
    %65 = vector.shape_cast %64 : vector<1x2x8x8xf32> to vector<2x8x8xf32>
    %66 = vector.shape_cast %65 : vector<2x8x8xf32> to vector<16x8xf32>
    %67 = vector.extract_strided_slice %57 {offsets = [3, 0, 0, 0], sizes = [1, 2, 8, 8], strides = [1, 1, 1, 1]} : vector<4x2x8x8xf32> to vector<1x2x8x8xf32>
    %68 = vector.shape_cast %67 : vector<1x2x8x8xf32> to vector<2x8x8xf32>
    %69 = vector.shape_cast %68 : vector<2x8x8xf32> to vector<16x8xf32>
    %70 = tpu.concatenate %60, %63, %66, %69 in 1 : vector<16x8xf32>, vector<16x8xf32>, vector<16x8xf32>, vector<16x8xf32> -> vector<16x32xf32>
    %71 = arith.truncf %70 : vector<16x32xf32> to vector<16x32xbf16>
    %cst_27 = arith.constant dense<0.000000e+00> : vector<16x32xf32>
    %72 = tpu.matmul %71, %6, %cst_27 {dimension_numbers = #tpu.dot_dimension_numbers<[1], [0], [0], [1], [0, 0, 1, 1], [], []>} : vector<16x32xbf16>, vector<32x32xbf16>, vector<16x32xf32> -> vector<16x32xf32>
    %73 = vector.broadcast %15 : vector<1x32xf32> to vector<16x32xf32>
    %74 = arith.addf %72, %73 : vector<16x32xf32>
    %75 = arith.addf %0, %74 : vector<16x32xf32>
    %cst_28 = arith.constant dense<0.000000e+00> : vector<16xf32>
    %76 = vector.multi_reduction <add>, %75, %cst_28 [1] : vector<16x32xf32> to vector<16xf32>
    %77 = vector.shape_cast %76 : vector<16xf32> to vector<16x1xf32>
    %cst_29 = arith.constant 3.200000e+01 : f32
    %78 = vector.broadcast %cst_29 : f32 to vector<16x1xf32>
    %79 = arith.divf %77, %78 : vector<16x1xf32>
    %80 = vector.broadcast %79 : vector<16x1xf32> to vector<16x32xf32>
    %81 = arith.subf %75, %80 : vector<16x32xf32>
    %82 = arith.mulf %81, %81 : vector<16x32xf32>
    %cst_30 = arith.constant dense<0.000000e+00> : vector<16xf32>
    %83 = vector.multi_reduction <add>, %82, %cst_30 [1] : vector<16x32xf32> to vector<16xf32>
    %84 = vector.shape_cast %83 : vector<16xf32> to vector<16x1xf32>
    %cst_31 = arith.constant 3.200000e+01 : f32
    %85 = vector.broadcast %cst_31 : f32 to vector<16x1xf32>
    %86 = arith.divf %84, %85 : vector<16x1xf32>
    %87 = vector.broadcast %79 : vector<16x1xf32> to vector<16x32xf32>
    %88 = arith.subf %75, %87 : vector<16x32xf32>
    %cst_32 = arith.constant 9.99999996E-13 : f32
    %89 = vector.broadcast %cst_32 : f32 to vector<16x1xf32>
    %90 = arith.addf %86, %89 : vector<16x1xf32>
    %91 = math.rsqrt %90 : vector<16x1xf32>
    %92 = vector.broadcast %91 : vector<16x1xf32> to vector<16x32xf32>
    %93 = arith.mulf %88, %92 : vector<16x32xf32>
    %94 = vector.broadcast %16 : vector<1x32xf32> to vector<16x32xf32>
    %95 = arith.mulf %93, %94 : vector<16x32xf32>
    %96 = vector.broadcast %17 : vector<1x32xf32> to vector<16x32xf32>
    %97 = arith.addf %95, %96 : vector<16x32xf32>
    %98 = arith.truncf %97 : vector<16x32xf32> to vector<16x32xbf16>
    %cst_33 = arith.constant dense<0.000000e+00> : vector<16x64xf32>
    %99 = tpu.matmul %98, %8, %cst_33 {dimension_numbers = #tpu.dot_dimension_numbers<[1], [0], [0], [1], [0, 0, 1, 1], [], []>} : vector<16x32xbf16>, vector<32x64xbf16>, vector<16x64xf32> -> vector<16x64xf32>
    %100 = vector.broadcast %12 : vector<1x64xf32> to vector<16x64xf32>
    %101 = arith.addf %99, %100 : vector<16x64xf32>
    %cst_34 = arith.constant 5.000000e-01 : f32
    %102 = vector.broadcast %cst_34 : f32 to vector<16x64xf32>
    %103 = arith.mulf %102, %101 : vector<16x64xf32>
    %cst_35 = arith.constant 4.471500e-02 : f32
    %104 = vector.broadcast %cst_35 : f32 to vector<16x64xf32>
    %105 = arith.mulf %104, %101 : vector<16x64xf32>
    %106 = arith.mulf %105, %101 : vector<16x64xf32>
    %107 = arith.mulf %106, %101 : vector<16x64xf32>
    %108 = arith.addf %101, %107 : vector<16x64xf32>
    %cst_36 = arith.constant 0.797884583 : f32
    %109 = vector.broadcast %cst_36 : f32 to vector<16x64xf32>
    %110 = arith.mulf %109, %108 : vector<16x64xf32>
    %111 = math.tanh %110 : vector<16x64xf32>
    %cst_37 = arith.constant 1.000000e+00 : f32
    %112 = vector.broadcast %cst_37 : f32 to vector<16x64xf32>
    %113 = arith.addf %112, %111 : vector<16x64xf32>
    %114 = arith.mulf %103, %113 : vector<16x64xf32>
    %115 = arith.truncf %114 : vector<16x64xf32> to vector<16x64xbf16>
    %cst_38 = arith.constant dense<0.000000e+00> : vector<16x32xf32>
    %116 = tpu.matmul %115, %10, %cst_38 {dimension_numbers = #tpu.dot_dimension_numbers<[1], [0], [0], [1], [0, 0, 1, 1], [], []>} : vector<16x64xbf16>, vector<64x32xbf16>, vector<16x32xf32> -> vector<16x32xf32>
    %117 = vector.broadcast %18 : vector<1x32xf32> to vector<16x32xf32>
    %118 = arith.addf %116, %117 : vector<16x32xf32>
    %119 = arith.addf %118, %97 : vector<16x32xf32>
    %cst_39 = arith.constant dense<0.000000e+00> : vector<16xf32>
    %120 = vector.multi_reduction <add>, %119, %cst_39 [1] : vector<16x32xf32> to vector<16xf32>
    %121 = vector.shape_cast %120 : vector<16xf32> to vector<16x1xf32>
    %cst_40 = arith.constant 3.200000e+01 : f32
    %122 = vector.broadcast %cst_40 : f32 to vector<16x1xf32>
    %123 = arith.divf %121, %122 : vector<16x1xf32>
    %124 = vector.broadcast %123 : vector<16x1xf32> to vector<16x32xf32>
    %125 = arith.subf %119, %124 : vector<16x32xf32>
    %126 = arith.mulf %125, %125 : vector<16x32xf32>
    %cst_41 = arith.constant dense<0.000000e+00> : vector<16xf32>
    %127 = vector.multi_reduction <add>, %126, %cst_41 [1] : vector<16x32xf32> to vector<16xf32>
    %128 = vector.shape_cast %127 : vector<16xf32> to vector<16x1xf32>
    %cst_42 = arith.constant 3.200000e+01 : f32
    %129 = vector.broadcast %cst_42 : f32 to vector<16x1xf32>
    %130 = arith.divf %128, %129 : vector<16x1xf32>
    %131 = vector.broadcast %123 : vector<16x1xf32> to vector<16x32xf32>
    %132 = arith.subf %119, %131 : vector<16x32xf32>
    %cst_43 = arith.constant 9.99999996E-13 : f32
    %133 = vector.broadcast %cst_43 : f32 to vector<16x1xf32>
    %134 = arith.addf %130, %133 : vector<16x1xf32>
    %135 = math.rsqrt %134 : vector<16x1xf32>
    %136 = vector.broadcast %135 : vector<16x1xf32> to vector<16x32xf32>
    %137 = arith.mulf %132, %136 : vector<16x32xf32>
    %138 = vector.broadcast %19 : vector<1x32xf32> to vector<16x32xf32>
    %139 = arith.mulf %137, %138 : vector<16x32xf32>
    %140 = vector.broadcast %20 : vector<1x32xf32> to vector<16x32xf32>
    %141 = arith.addf %139, %140 : vector<16x32xf32>
    %c1 = arith.constant 1 : index
    %c0_44 = arith.constant 0 : index
    %c0_45 = arith.constant 0 : index
    %c0_46 = arith.constant 0 : index
    %142 = vector.load %arg1[%c1, %c0_44, %c0_45, %c0_46] : memref<2x4x32x24xbf16, #tpu.memory_space<vmem>>, vector<1x4x32x24xbf16>
    %143 = vector.shape_cast %142 : vector<1x4x32x24xbf16> to vector<4x32x24xbf16>
    %c1_47 = arith.constant 1 : index
    %c0_48 = arith.constant 0 : index
    %c0_49 = arith.constant 0 : index
    %144 = vector.load %arg5[%c1_47, %c0_48, %c0_49] : memref<2x4x24xf32, #tpu.memory_space<vmem>>, vector<1x4x24xf32>
    %145 = vector.shape_cast %144 : vector<1x4x24xf32> to vector<4x24xf32>
    %c1_50 = arith.constant 1 : index
    %c0_51 = arith.constant 0 : index
    %c0_52 = arith.constant 0 : index
    %146 = vector.load %arg2[%c1_50, %c0_51, %c0_52] : memref<2x32x32xbf16, #tpu.memory_space<vmem>>, vector<1x32x32xbf16>
    %147 = vector.shape_cast %146 : vector<1x32x32xbf16> to vector<32x32xbf16>
    %c1_53 = arith.constant 1 : index
    %c0_54 = arith.constant 0 : index
    %c0_55 = arith.constant 0 : index
    %148 = vector.load %arg3[%c1_53, %c0_54, %c0_55] : memref<2x32x64xbf16, #tpu.memory_space<vmem>>, vector<1x32x64xbf16>
    %149 = vector.shape_cast %148 : vector<1x32x64xbf16> to vector<32x64xbf16>
    %c1_56 = arith.constant 1 : index
    %c0_57 = arith.constant 0 : index
    %c0_58 = arith.constant 0 : index
    %150 = vector.load %arg4[%c1_56, %c0_57, %c0_58] : memref<2x64x32xbf16, #tpu.memory_space<vmem>>, vector<1x64x32xbf16>
    %151 = vector.shape_cast %150 : vector<1x64x32xbf16> to vector<64x32xbf16>
    %c1_59 = arith.constant 1 : index
    %c0_60 = arith.constant 0 : index
    %c0_61 = arith.constant 0 : index
    %152 = vector.load %arg6[%c1_59, %c0_60, %c0_61] : memref<2x1x64xf32, #tpu.memory_space<vmem>>, vector<1x1x64xf32>
    %153 = vector.shape_cast %152 : vector<1x1x64xf32> to vector<1x64xf32>
    %c1_62 = arith.constant 1 : index
    %c0_63 = arith.constant 0 : index
    %c0_64 = arith.constant 0 : index
    %154 = vector.load %arg7[%c1_62, %c0_63, %c0_64] : memref<2x6x32xf32, #tpu.memory_space<vmem>>, vector<1x6x32xf32>
    %155 = vector.shape_cast %154 : vector<1x6x32xf32> to vector<6x32xf32>
    %156 = vector.extract_strided_slice %155 {offsets = [0, 0], sizes = [1, 32], strides = [1, 1]} : vector<6x32xf32> to vector<1x32xf32>
    %157 = vector.extract_strided_slice %155 {offsets = [1, 0], sizes = [1, 32], strides = [1, 1]} : vector<6x32xf32> to vector<1x32xf32>
    %158 = vector.extract_strided_slice %155 {offsets = [2, 0], sizes = [1, 32], strides = [1, 1]} : vector<6x32xf32> to vector<1x32xf32>
    %159 = vector.extract_strided_slice %155 {offsets = [3, 0], sizes = [1, 32], strides = [1, 1]} : vector<6x32xf32> to vector<1x32xf32>
    %160 = vector.extract_strided_slice %155 {offsets = [4, 0], sizes = [1, 32], strides = [1, 1]} : vector<6x32xf32> to vector<1x32xf32>
    %161 = vector.extract_strided_slice %155 {offsets = [5, 0], sizes = [1, 32], strides = [1, 1]} : vector<6x32xf32> to vector<1x32xf32>
    %162 = arith.truncf %141 : vector<16x32xf32> to vector<16x32xbf16>
    %163 = vector.shape_cast %162 : vector<16x32xbf16> to vector<2x8x32xbf16>
    %164 = vector.shape_cast %163 : vector<2x8x32xbf16> to vector<1x2x8x32xbf16>
    %165 = vector.shape_cast %164 : vector<1x2x8x32xbf16> to vector<1x2x8x32xbf16>
    %166 = vector.broadcast %165 : vector<1x2x8x32xbf16> to vector<4x2x8x32xbf16>
    %167 = vector.shape_cast %166 : vector<4x2x8x32xbf16> to vector<8x8x32xbf16>
    %168 = vector.shape_cast %143 : vector<4x32x24xbf16> to vector<4x1x32x24xbf16>
    %169 = vector.shape_cast %168 : vector<4x1x32x24xbf16> to vector<4x1x32x24xbf16>
    %170 = vector.broadcast %169 : vector<4x1x32x24xbf16> to vector<4x2x32x24xbf16>
    %171 = vector.shape_cast %170 : vector<4x2x32x24xbf16> to vector<8x32x24xbf16>
    %172 = vector.shape_cast %145 : vector<4x24xf32> to vector<4x1x1x24xf32>
    %173 = vector.shape_cast %172 : vector<4x1x1x24xf32> to vector<4x1x1x24xf32>
    %174 = vector.broadcast %173 : vector<4x1x1x24xf32> to vector<4x2x1x24xf32>
    %175 = vector.shape_cast %174 : vector<4x2x1x24xf32> to vector<8x1x24xf32>
    "tpu.trace_start"() <{level = 10 : i32, message = "bsd,bdk->bsk"}> : () -> ()
    %cst_65 = arith.constant dense<0.000000e+00> : vector<8x8x24xf32>
    %176 = tpu.matmul %167, %171, %cst_65 {dimension_numbers = #tpu.dot_dimension_numbers<[2], [1], [1], [2], [0, 0, 0, 1, 1, 2], [0], [0]>} : vector<8x8x32xbf16>, vector<8x32x24xbf16>, vector<8x8x24xf32> -> vector<8x8x24xf32>
    "tpu.trace_stop"() : () -> ()
    %177 = vector.broadcast %175 : vector<8x1x24xf32> to vector<8x8x24xf32>
    %178 = arith.addf %176, %177 : vector<8x8x24xf32>
    %179 = vector.extract_strided_slice %178 {offsets = [0, 0, 0], sizes = [8, 8, 8], strides = [1, 1, 1]} : vector<8x8x24xf32> to vector<8x8x8xf32>
    %180 = arith.truncf %179 : vector<8x8x8xf32> to vector<8x8x8xbf16>
    %181 = vector.extract_strided_slice %178 {offsets = [0, 0, 8], sizes = [8, 8, 8], strides = [1, 1, 1]} : vector<8x8x24xf32> to vector<8x8x8xf32>
    %182 = arith.truncf %181 : vector<8x8x8xf32> to vector<8x8x8xbf16>
    %183 = vector.extract_strided_slice %178 {offsets = [0, 0, 16], sizes = [8, 8, 8], strides = [1, 1, 1]} : vector<8x8x24xf32> to vector<8x8x8xf32>
    %184 = arith.truncf %183 : vector<8x8x8xf32> to vector<8x8x8xbf16>
    "tpu.trace_start"() <{level = 10 : i32, message = "bqd,bkd->bqk"}> : () -> ()
    %cst_66 = arith.constant dense<0.000000e+00> : vector<8x8x8xf32>
    %185 = tpu.matmul %180, %182, %cst_66 {dimension_numbers = #tpu.dot_dimension_numbers<[2], [2], [1], [1], [0, 0, 0, 1, 1, 1], [0], [0]>} : vector<8x8x8xbf16>, vector<8x8x8xbf16>, vector<8x8x8xf32> -> vector<8x8x8xf32>
    "tpu.trace_stop"() : () -> ()
    %cst_67 = arith.constant dense<0xFF800000> : vector<8x8xf32>
    %186 = vector.multi_reduction <maximumf>, %185, %cst_67 [2] : vector<8x8x8xf32> to vector<8x8xf32>
    %187 = vector.shape_cast %186 : vector<8x8xf32> to vector<8x8x1xf32>
    %188 = vector.broadcast %187 : vector<8x8x1xf32> to vector<8x8x8xf32>
    %189 = arith.subf %185, %188 : vector<8x8x8xf32>
    %190 = math.exp %189 : vector<8x8x8xf32>
    %cst_68 = arith.constant dense<0.000000e+00> : vector<8x8xf32>
    %191 = vector.multi_reduction <add>, %190, %cst_68 [2] : vector<8x8x8xf32> to vector<8x8xf32>
    %192 = vector.shape_cast %191 : vector<8x8xf32> to vector<8x8x1xf32>
    %193 = tpu.reciprocal %192 {approx = true} : vector<8x8x1xf32> -> vector<8x8x1xf32>
    %194 = vector.broadcast %193 : vector<8x8x1xf32> to vector<8x8x8xf32>
    %195 = arith.mulf %190, %194 : vector<8x8x8xf32>
    %196 = arith.truncf %195 : vector<8x8x8xf32> to vector<8x8x8xbf16>
    "tpu.trace_start"() <{level = 10 : i32, message = "bqk,bkd->bqd"}> : () -> ()
    %cst_69 = arith.constant dense<0.000000e+00> : vector<8x8x8xf32>
    %197 = tpu.matmul %196, %184, %cst_69 {dimension_numbers = #tpu.dot_dimension_numbers<[2], [1], [1], [2], [0, 0, 0, 1, 1, 2], [0], [0]>} : vector<8x8x8xbf16>, vector<8x8x8xbf16>, vector<8x8x8xf32> -> vector<8x8x8xf32>
    "tpu.trace_stop"() : () -> ()
    %198 = vector.shape_cast %197 : vector<8x8x8xf32> to vector<4x2x8x8xf32>
    %199 = vector.extract_strided_slice %198 {offsets = [0, 0, 0, 0], sizes = [1, 2, 8, 8], strides = [1, 1, 1, 1]} : vector<4x2x8x8xf32> to vector<1x2x8x8xf32>
    %200 = vector.shape_cast %199 : vector<1x2x8x8xf32> to vector<2x8x8xf32>
    %201 = vector.shape_cast %200 : vector<2x8x8xf32> to vector<16x8xf32>
    %202 = vector.extract_strided_slice %198 {offsets = [1, 0, 0, 0], sizes = [1, 2, 8, 8], strides = [1, 1, 1, 1]} : vector<4x2x8x8xf32> to vector<1x2x8x8xf32>
    %203 = vector.shape_cast %202 : vector<1x2x8x8xf32> to vector<2x8x8xf32>
    %204 = vector.shape_cast %203 : vector<2x8x8xf32> to vector<16x8xf32>
    %205 = vector.extract_strided_slice %198 {offsets = [2, 0, 0, 0], sizes = [1, 2, 8, 8], strides = [1, 1, 1, 1]} : vector<4x2x8x8xf32> to vector<1x2x8x8xf32>
    %206 = vector.shape_cast %205 : vector<1x2x8x8xf32> to vector<2x8x8xf32>
    %207 = vector.shape_cast %206 : vector<2x8x8xf32> to vector<16x8xf32>
    %208 = vector.extract_strided_slice %198 {offsets = [3, 0, 0, 0], sizes = [1, 2, 8, 8], strides = [1, 1, 1, 1]} : vector<4x2x8x8xf32> to vector<1x2x8x8xf32>
    %209 = vector.shape_cast %208 : vector<1x2x8x8xf32> to vector<2x8x8xf32>
    %210 = vector.shape_cast %209 : vector<2x8x8xf32> to vector<16x8xf32>
    %211 = tpu.concatenate %201, %204, %207, %210 in 1 : vector<16x8xf32>, vector<16x8xf32>, vector<16x8xf32>, vector<16x8xf32> -> vector<16x32xf32>
    %212 = arith.truncf %211 : vector<16x32xf32> to vector<16x32xbf16>
    %cst_70 = arith.constant dense<0.000000e+00> : vector<16x32xf32>
    %213 = tpu.matmul %212, %147, %cst_70 {dimension_numbers = #tpu.dot_dimension_numbers<[1], [0], [0], [1], [0, 0, 1, 1], [], []>} : vector<16x32xbf16>, vector<32x32xbf16>, vector<16x32xf32> -> vector<16x32xf32>
    %214 = vector.broadcast %156 : vector<1x32xf32> to vector<16x32xf32>
    %215 = arith.addf %213, %214 : vector<16x32xf32>
    %216 = arith.addf %141, %215 : vector<16x32xf32>
    %cst_71 = arith.constant dense<0.000000e+00> : vector<16xf32>
    %217 = vector.multi_reduction <add>, %216, %cst_71 [1] : vector<16x32xf32> to vector<16xf32>
    %218 = vector.shape_cast %217 : vector<16xf32> to vector<16x1xf32>
    %cst_72 = arith.constant 3.200000e+01 : f32
    %219 = vector.broadcast %cst_72 : f32 to vector<16x1xf32>
    %220 = arith.divf %218, %219 : vector<16x1xf32>
    %221 = vector.broadcast %220 : vector<16x1xf32> to vector<16x32xf32>
    %222 = arith.subf %216, %221 : vector<16x32xf32>
    %223 = arith.mulf %222, %222 : vector<16x32xf32>
    %cst_73 = arith.constant dense<0.000000e+00> : vector<16xf32>
    %224 = vector.multi_reduction <add>, %223, %cst_73 [1] : vector<16x32xf32> to vector<16xf32>
    %225 = vector.shape_cast %224 : vector<16xf32> to vector<16x1xf32>
    %cst_74 = arith.constant 3.200000e+01 : f32
    %226 = vector.broadcast %cst_74 : f32 to vector<16x1xf32>
    %227 = arith.divf %225, %226 : vector<16x1xf32>
    %228 = vector.broadcast %220 : vector<16x1xf32> to vector<16x32xf32>
    %229 = arith.subf %216, %228 : vector<16x32xf32>
    %cst_75 = arith.constant 9.99999996E-13 : f32
    %230 = vector.broadcast %cst_75 : f32 to vector<16x1xf32>
    %231 = arith.addf %227, %230 : vector<16x1xf32>
    %232 = math.rsqrt %231 : vector<16x1xf32>
    %233 = vector.broadcast %232 : vector<16x1xf32> to vector<16x32xf32>
    %234 = arith.mulf %229, %233 : vector<16x32xf32>
    %235 = vector.broadcast %157 : vector<1x32xf32> to vector<16x32xf32>
    %236 = arith.mulf %234, %235 : vector<16x32xf32>
    %237 = vector.broadcast %158 : vector<1x32xf32> to vector<16x32xf32>
    %238 = arith.addf %236, %237 : vector<16x32xf32>
    %239 = arith.truncf %238 : vector<16x32xf32> to vector<16x32xbf16>
    %cst_76 = arith.constant dense<0.000000e+00> : vector<16x64xf32>
    %240 = tpu.matmul %239, %149, %cst_76 {dimension_numbers = #tpu.dot_dimension_numbers<[1], [0], [0], [1], [0, 0, 1, 1], [], []>} : vector<16x32xbf16>, vector<32x64xbf16>, vector<16x64xf32> -> vector<16x64xf32>
    %241 = vector.broadcast %153 : vector<1x64xf32> to vector<16x64xf32>
    %242 = arith.addf %240, %241 : vector<16x64xf32>
    %cst_77 = arith.constant 5.000000e-01 : f32
    %243 = vector.broadcast %cst_77 : f32 to vector<16x64xf32>
    %244 = arith.mulf %243, %242 : vector<16x64xf32>
    %cst_78 = arith.constant 4.471500e-02 : f32
    %245 = vector.broadcast %cst_78 : f32 to vector<16x64xf32>
    %246 = arith.mulf %245, %242 : vector<16x64xf32>
    %247 = arith.mulf %246, %242 : vector<16x64xf32>
    %248 = arith.mulf %247, %242 : vector<16x64xf32>
    %249 = arith.addf %242, %248 : vector<16x64xf32>
    %cst_79 = arith.constant 0.797884583 : f32
    %250 = vector.broadcast %cst_79 : f32 to vector<16x64xf32>
    %251 = arith.mulf %250, %249 : vector<16x64xf32>
    %252 = math.tanh %251 : vector<16x64xf32>
    %cst_80 = arith.constant 1.000000e+00 : f32
    %253 = vector.broadcast %cst_80 : f32 to vector<16x64xf32>
    %254 = arith.addf %253, %252 : vector<16x64xf32>
    %255 = arith.mulf %244, %254 : vector<16x64xf32>
    %256 = arith.truncf %255 : vector<16x64xf32> to vector<16x64xbf16>
    %cst_81 = arith.constant dense<0.000000e+00> : vector<16x32xf32>
    %257 = tpu.matmul %256, %151, %cst_81 {dimension_numbers = #tpu.dot_dimension_numbers<[1], [0], [0], [1], [0, 0, 1, 1], [], []>} : vector<16x64xbf16>, vector<64x32xbf16>, vector<16x32xf32> -> vector<16x32xf32>
    %258 = vector.broadcast %159 : vector<1x32xf32> to vector<16x32xf32>
    %259 = arith.addf %257, %258 : vector<16x32xf32>
    %260 = arith.addf %259, %238 : vector<16x32xf32>
    %cst_82 = arith.constant dense<0.000000e+00> : vector<16xf32>
    %261 = vector.multi_reduction <add>, %260, %cst_82 [1] : vector<16x32xf32> to vector<16xf32>
    %262 = vector.shape_cast %261 : vector<16xf32> to vector<16x1xf32>
    %cst_83 = arith.constant 3.200000e+01 : f32
    %263 = vector.broadcast %cst_83 : f32 to vector<16x1xf32>
    %264 = arith.divf %262, %263 : vector<16x1xf32>
    %265 = vector.broadcast %264 : vector<16x1xf32> to vector<16x32xf32>
    %266 = arith.subf %260, %265 : vector<16x32xf32>
    %267 = arith.mulf %266, %266 : vector<16x32xf32>
    %cst_84 = arith.constant dense<0.000000e+00> : vector<16xf32>
    %268 = vector.multi_reduction <add>, %267, %cst_84 [1] : vector<16x32xf32> to vector<16xf32>
    %269 = vector.shape_cast %268 : vector<16xf32> to vector<16x1xf32>
    %cst_85 = arith.constant 3.200000e+01 : f32
    %270 = vector.broadcast %cst_85 : f32 to vector<16x1xf32>
    %271 = arith.divf %269, %270 : vector<16x1xf32>
    %272 = vector.broadcast %264 : vector<16x1xf32> to vector<16x32xf32>
    %273 = arith.subf %260, %272 : vector<16x32xf32>
    %cst_86 = arith.constant 9.99999996E-13 : f32
    %274 = vector.broadcast %cst_86 : f32 to vector<16x1xf32>
    %275 = arith.addf %271, %274 : vector<16x1xf32>
    %276 = math.rsqrt %275 : vector<16x1xf32>
    %277 = vector.broadcast %276 : vector<16x1xf32> to vector<16x32xf32>
    %278 = arith.mulf %273, %277 : vector<16x32xf32>
    %279 = vector.broadcast %160 : vector<1x32xf32> to vector<16x32xf32>
    %280 = arith.mulf %278, %279 : vector<16x32xf32>
    %281 = vector.broadcast %161 : vector<1x32xf32> to vector<16x32xf32>
    %282 = arith.addf %280, %281 : vector<16x32xf32>
    %c0_87 = arith.constant 0 : index
    %c0_88 = arith.constant 0 : index
    %283 = vector.load %arg8[%c0_87, %c0_88] : memref<16x32xf32, #tpu.memory_space<vmem>>, vector<16x32xf32>
    tpu.vector_store %arg8[%c0_87, %c0_88], %282 {strides = array<i32>} : memref<16x32xf32, #tpu.memory_space<vmem>>, vector<16x32xf32>,
    return
  }
}

</mosaic_0001>

<llo_original>
// kernel: tpu_custom_call.1
$region0: #{tpu_custom_call.1}
  #allocation0 [shape = 'u32[]', space=smem, size = 0x4, offset = 0x4, fixed_abs, tag = 'smem constant byte address 0x4 - core index']
  #allocation1 [shape = 'u32[72,128]{1,0:T(1,128)}', space=vmem, size = 0x9000, scoped, tag = 'internal scratch']
  %s0 = inlined_call_operand.vmem [shape: f32[16,32], index: 0, kind: input, shape index: {}]
  %s1 = inlined_call_operand.vmem [shape: bf16[2,4,32,24], index: 1, kind: input, shape index: {}]
  %s2 = inlined_call_operand.vmem [shape: bf16[2,32,32], index: 2, kind: input, shape index: {}]
  %s3 = inlined_call_operand.vmem [shape: bf16[2,32,64], index: 3, kind: input, shape index: {}]
  %s4 = inlined_call_operand.vmem [shape: bf16[2,64,32], index: 4, kind: input, shape index: {}]
  %s5 = inlined_call_operand.vmem [shape: f32[2,4,24], index: 5, kind: input, shape index: {}]
  %s6 = inlined_call_operand.vmem [shape: f32[2,1,64], index: 6, kind: input, shape index: {}]
  %s7 = inlined_call_operand.vmem [shape: f32[2,6,32], index: 7, kind: input, shape index: {}]
  %s8 = inlined_call_operand.hbm [shape: f32[16,32], index: 8, kind: output, shape index: {}]
  %s9 = sld [smem:[#allocation0]]
  $region42: #{tpu_custom_call.1} parent=0
    _
  %s11 = ssub.s32 1, %s9
  %s12 = scalar_select 0, %s11, %s9
  $region1: #{tpu_custom_call.1} parent=0
    #allocation2 [shape = 'u8[8192]{0}', space=vmem, size = 0x2000, scoped, tag = 'output window, operand 0, single buffered']
    #allocation3 [shape = 's32[1]{0}', space=sflag, size = 0x4, scoped, tag = 'scoped memory for tpu_custom_call.1']
    %13 = vsyncpa [#allocation3], 0
    // Predicated region
    $region2: #{tpu_custom_call.1} parent=1 // pred_check
      _
    $region3: #{tpu_custom_call.1} parent=1 // pred_check_branch
      %15 = sbr.rel (0) target = $region5
    $region4: #{tpu_custom_call.1} parent=1 // pred_region
      _
    $region5: #{tpu_custom_call.1} parent=1 // pred_fallthru
      _
    // Predicated region
    $region6: #{tpu_custom_call.1} parent=1 // pred_check
      _
    $region7: #{tpu_custom_call.1} parent=1 // pred_check_branch
      %17 = sbr.rel (0) target = $region9
    $region8: #{tpu_custom_call.1} parent=1 // pred_region
      _
    $region9: #{tpu_custom_call.1} parent=1 // pred_fallthru
      _
    // Predicated region
    $region10: #{tpu_custom_call.1} parent=1 // pred_check
      _
    $region11: #{tpu_custom_call.1} parent=1 // pred_check_branch
      %19 = sbr.rel (0) target = $region13
    $region12: #{tpu_custom_call.1} parent=1 // pred_region
      _
    $region13: #{tpu_custom_call.1} parent=1 // pred_fallthru
      _
    // Predicated region
    $region14: #{tpu_custom_call.1} parent=1 // pred_check
      _
    $region15: #{tpu_custom_call.1} parent=1 // pred_check_branch
      %21 = sbr.rel (0) target = $region17
    $region16: #{tpu_custom_call.1} parent=1 // pred_region
      _
    $region17: #{tpu_custom_call.1} parent=1 // pred_fallthru
      _
    // Predicated region
    $region18: #{tpu_custom_call.1} parent=1 // pred_check
      _
    $region19: #{tpu_custom_call.1} parent=1 // pred_check_branch
      %23 = sbr.rel (0) target = $region21
    $region20: #{tpu_custom_call.1} parent=1 // pred_region
      _
    $region21: #{tpu_custom_call.1} parent=1 // pred_fallthru
      _
    // Predicated region
    $region22: #{tpu_custom_call.1} parent=1 // pred_check
      _
    $region23: #{tpu_custom_call.1} parent=1 // pred_check_branch
      %25 = sbr.rel (0) target = $region25
    $region24: #{tpu_custom_call.1} parent=1 // pred_region
      _
    $region25: #{tpu_custom_call.1} parent=1 // pred_fallthru
      _
    // Predicated region
    $region26: #{tpu_custom_call.1} parent=1 // pred_check
      _
    $region27: #{tpu_custom_call.1} parent=1 // pred_check_branch
      %27 = sbr.rel (0) target = $region29
    $region28: #{tpu_custom_call.1} parent=1 // pred_region
      _
    $region29: #{tpu_custom_call.1} parent=1 // pred_fallthru
      _
    // Predicated region
    $region30: #{tpu_custom_call.1} parent=1 // pred_check
      _
    $region31: #{tpu_custom_call.1} parent=1 // pred_check_branch
      %29 = sbr.rel (0) target = $region33
    $region32: #{tpu_custom_call.1} parent=1 // pred_region
      _
    $region33: #{tpu_custom_call.1} parent=1 // pred_fallthru
      _
    %v31 = vld [vmem:[%s0] sm:$0xff]
    %v32 = vld [vmem:[%s0 + $0x8] sm:$0xff]
    %v33 = vld [vmem:[%s1] sm:$0xf]
    %v34 = vld [vmem:[%s1 + $0x4] sm:$0xf]
    %v35 = vld [vmem:[%s1 + $0x8] sm:$0xf]
    %v36 = vld [vmem:[%s1 + $0xc] sm:$0xf]
    %v37 = vld [vmem:[%s1 + $0x10] sm:$0xf]
    %v38 = vld [vmem:[%s1 + $0x14] sm:$0xf]
    %v39 = vld [vmem:[%s1 + $0x18] sm:$0xf]
    %v40 = vld [vmem:[%s1 + $0x1c] sm:$0xf]
    %v41 = vld [vmem:[%s1 + $0x20] sm:$0xf]
    %v42 = vld [vmem:[%s1 + $0x24] sm:$0xf]
    %v43 = vld [vmem:[%s1 + $0x28] sm:$0xf]
    %v44 = vld [vmem:[%s1 + $0x2c] sm:$0xf]
    %v45 = vld [vmem:[%s1 + $0x30] sm:$0xf]
    %v46 = vld [vmem:[%s1 + $0x34] sm:$0xf]
    %v47 = vld [vmem:[%s1 + $0x38] sm:$0xf]
    %v48 = vld [vmem:[%s1 + $0x3c] sm:$0xf]
    %v49 = vld [vmem:[%s5] sm:$0xf]
    %v50 = vld [vmem:[%s2] sm:$0xf]
    %v51 = vld [vmem:[%s2 + $0x4] sm:$0xf]
    %v52 = vld [vmem:[%s2 + $0x8] sm:$0xf]
    %v53 = vld [vmem:[%s2 + $0xc] sm:$0xf]
    %v54 = vld [vmem:[%s3] sm:$0xf]
    %v55 = vld [vmem:[%s3 + $0x4] sm:$0xf]
    %v56 = vld [vmem:[%s3 + $0x8] sm:$0xf]
    %v57 = vld [vmem:[%s3 + $0xc] sm:$0xf]
    %v58 = vld [vmem:[%s4] sm:$0xf]
    %v59 = vld [vmem:[%s4 + $0x4] sm:$0xf]
    %v60 = vld [vmem:[%s4 + $0x8] sm:$0xf]
    %v61 = vld [vmem:[%s4 + $0xc] sm:$0xf]
    %v62 = vld [vmem:[%s4 + $0x10] sm:$0xf]
    %v63 = vld [vmem:[%s4 + $0x14] sm:$0xf]
    %v64 = vld [vmem:[%s4 + $0x18] sm:$0xf]
    %v65 = vld [vmem:[%s4 + $0x1c] sm:$0xf]
    %v66 = vld [vmem:[%s6] sm:$0x1]
    %v67 = vld [vmem:[%s7] sm:$0x3f]
    %v68 = vpack.c.bf16 %v31, %v31
    %v69 = vpack.c.bf16 %v32, %v32
    %v71 = vrot.slane %v49, 1
    %v72 = vrot.slane %v49, 2
    %v73 = vrot.slane %v49, 3
    %v74 = vperm.slane %v49, 0
    %v75 = vperm.slane %v71, 0
    %v76 = vperm.slane %v72, 0
    %v77 = vperm.slane %v73, 0
    %v86 = vunpack.c.l.b16 %v33
    %v87 = vunpack.c.l.b16 %v34
    %v88 = vunpack.c.l.b16 %v35
    %v89 = vunpack.c.l.b16 %v36
    %v90 = vpack.c.b16 %v87, %v86
    %v91 = vpack.c.b16 %v89, %v88
    %vm94 = vcmask 261120
    %v96 = vsel %vm94, %v68, 0
    %98 = vmatpush.bf16.msra.mxu0 0
    %99 = vmatpush.bf16.msra.mxu0 0
    %100 = vmatpush.bf16.msra.mxu0 0
    %101 = vmatpush.bf16.msra.mxu0 0
    %102 = vmatpush.bf16.msra.mxu0 0
    %103 = vmatpush.bf16.msra.mxu0 0
    %104 = vmatpush.bf16.msra.mxu0 %v91
    %105 = vmatpush.bf16.msra.mxu0 %v90
    %106 = vmatmul.bf16.gmra.mxu0 %v96
    %v107 = vpop.f32.mrf.mxu0
    %v108 = vadd.f32 %v74, %v107
    %v109 = vpop.f32.mrf.mxu0
    %110 = vdwg.mxu0
    %v112 = vsel %vm94, %v69, 0
    %114 = vmatpush.bf16.msra.mxu0 0
    %115 = vmatpush.bf16.msra.mxu0 0
    %116 = vmatpush.bf16.msra.mxu0 0
    %117 = vmatpush.bf16.msra.mxu0 0
    %118 = vmatpush.bf16.msra.mxu0 0
    %119 = vmatpush.bf16.msra.mxu0 0
    %120 = vmatpush.bf16.msra.mxu0 %v91
    %121 = vmatpush.bf16.msra.mxu0 %v90
    %122 = vmatmul.bf16.gmra.mxu0 %v112
    %v123 = vpop.f32.mrf.mxu0
    %v124 = vadd.f32 %v74, %v123
    %v125 = vpop.f32.mrf.mxu0
    %126 = vdwg.mxu0
    %v131 = vunpack.c.l.b16 %v37
    %v132 = vunpack.c.l.b16 %v38
    %v133 = vunpack.c.l.b16 %v39
    %v134 = vunpack.c.l.b16 %v40
    %v135 = vpack.c.b16 %v132, %v131
    %v136 = vpack.c.b16 %v134, %v133
    %139 = vmatpush.bf16.msra.mxu0 0
    %140 = vmatpush.bf16.msra.mxu0 0
    %141 = vmatpush.bf16.msra.mxu0 0
    %142 = vmatpush.bf16.msra.mxu0 0
    %143 = vmatpush.bf16.msra.mxu0 0
    %144 = vmatpush.bf16.msra.mxu0 0
    %145 = vmatpush.bf16.msra.mxu0 %v136
    %146 = vmatpush.bf16.msra.mxu0 %v135
    %147 = vmatmul.bf16.gmra.mxu0 %v96
    %v148 = vpop.f32.mrf.mxu0
    %v149 = vadd.f32 %v75, %v148
    %v150 = vpop.f32.mrf.mxu0
    %151 = vdwg.mxu0
    %152 = vmatpush.bf16.msra.mxu0 0
    %153 = vmatpush.bf16.msra.mxu0 0
    %154 = vmatpush.bf16.msra.mxu0 0
    %155 = vmatpush.bf16.msra.mxu0 0
    %156 = vmatpush.bf16.msra.mxu0 0
    %157 = vmatpush.bf16.msra.mxu0 0
    %158 = vmatpush.bf16.msra.mxu0 %v136
    %159 = vmatpush.bf16.msra.mxu0 %v135
    %160 = vmatmul.bf16.gmra.mxu0 %v112
    %v161 = vpop.f32.mrf.mxu0
    %v162 = vadd.f32 %v75, %v161
    %v163 = vpop.f32.mrf.mxu0
    %164 = vdwg.mxu0
    %v169 = vunpack.c.l.b16 %v41
    %v170 = vunpack.c.l.b16 %v42
    %v171 = vunpack.c.l.b16 %v43
    %v172 = vunpack.c.l.b16 %v44
    %v173 = vpack.c.b16 %v170, %v169
    %v174 = vpack.c.b16 %v172, %v171
    %177 = vmatpush.bf16.msra.mxu0 0
    %178 = vmatpush.bf16.msra.mxu0 0
    %179 = vmatpush.bf16.msra.mxu0 0
    %180 = vmatpush.bf16.msra.mxu0 0
    %181 = vmatpush.bf16.msra.mxu0 0
    %182 = vmatpush.bf16.msra.mxu0 0
    %183 = vmatpush.bf16.msra.mxu0 %v174
    %184 = vmatpush.bf16.msra.mxu0 %v173
    %185 = vmatmul.bf16.gmra.mxu0 %v96
    %v186 = vpop.f32.mrf.mxu0
    %v187 = vadd.f32 %v76, %v186
    %v188 = vpop.f32.mrf.mxu0
    %189 = vdwg.mxu0
    %190 = vmatpush.bf16.msra.mxu0 0
    %191 = vmatpush.bf16.msra.mxu0 0
    %192 = vmatpush.bf16.msra.mxu0 0
    %193 = vmatpush.bf16.msra.mxu0 0
    %194 = vmatpush.bf16.msra.mxu0 0
    %195 = vmatpush.bf16.msra.mxu0 0
    %196 = vmatpush.bf16.msra.mxu0 %v174
    %197 = vmatpush.bf16.msra.mxu0 %v173
    %198 = vmatmul.bf16.gmra.mxu0 %v112
    %v199 = vpop.f32.mrf.mxu0
    %v200 = vadd.f32 %v76, %v199
    %v201 = vpop.f32.mrf.mxu0
    %202 = vdwg.mxu0
    %v207 = vunpack.c.l.b16 %v45
    %v208 = vunpack.c.l.b16 %v46
    %v209 = vunpack.c.l.b16 %v47
    %v210 = vunpack.c.l.b16 %v48
    %v211 = vpack.c.b16 %v208, %v207
    %v212 = vpack.c.b16 %v210, %v209
    %215 = vmatpush.bf16.msra.mxu0 0
    %216 = vmatpush.bf16.msra.mxu0 0
    %217 = vmatpush.bf16.msra.mxu0 0
    %218 = vmatpush.bf16.msra.mxu0 0
    %219 = vmatpush.bf16.msra.mxu0 0
    %220 = vmatpush.bf16.msra.mxu0 0
    %221 = vmatpush.bf16.msra.mxu0 %v212
    %222 = vmatpush.bf16.msra.mxu0 %v211
    %223 = vmatmul.bf16.gmra.mxu0 %v96
    %v224 = vpop.f32.mrf.mxu0
    %v225 = vadd.f32 %v77, %v224
    %v226 = vpop.f32.mrf.mxu0
    %227 = vdwg.mxu0
    %228 = vmatpush.bf16.msra.mxu0 0
    %229 = vmatpush.bf16.msra.mxu0 0
    %230 = vmatpush.bf16.msra.mxu0 0
    %231 = vmatpush.bf16.msra.mxu0 0
    %232 = vmatpush.bf16.msra.mxu0 0
    %233 = vmatpush.bf16.msra.mxu0 0
    %234 = vmatpush.bf16.msra.mxu0 %v212
    %235 = vmatpush.bf16.msra.mxu0 %v211
    %236 = vmatmul.bf16.gmra.mxu0 %v112
    %v237 = vpop.f32.mrf.mxu0
    %v238 = vadd.f32 %v77, %v237
    %v239 = vpop.f32.mrf.mxu0
    %240 = vdwg.mxu0
    %v241 = vpack.c.bf16 %v108, %v108
    %v242 = vpack.c.bf16 %v124, %v124
    %v243 = vpack.c.bf16 %v149, %v149
    %v244 = vpack.c.bf16 %v162, %v162
    %v245 = vpack.c.bf16 %v187, %v187
    %v246 = vpack.c.bf16 %v200, %v200
    %v247 = vpack.c.bf16 %v225, %v225
    %v248 = vpack.c.bf16 %v238, %v238
    %v250 = vunpack.c.l.b16 %v241
    %v251 = vpack.c.b16 %v250, %v250
    %252 = vrot.lane.b32.xlu0 %v251, 120
    %v253 = vpop.permute.xlu0 %252
    %vm254 = vcmask 64512
    %v256 = vsel %vm254, %v241, 0
    %v259 = vsel %vm254, %v253, 0
    %261 = vmatpush.bf16.xpose.msra.mxu0 0
    %262 = vmatpush.bf16.xpose.msra.mxu0 0
    %263 = vmatpush.bf16.xpose.msra.mxu0 0
    %264 = vmatpush.bf16.xpose.msra.mxu0 0
    %265 = vmatpush.bf16.xpose.msra.mxu0 0
    %266 = vmatpush.bf16.xpose.msra.mxu0 0
    %267 = vmatpush.bf16.xpose.msra.mxu0 0
    %268 = vmatpush.bf16.xpose.msra.mxu0 %v259
    %269 = vmatmul.bf16.gmra.mxu0 %v256
    %v270 = vpop.f32.mrf.mxu0
    %v271 = vadd.f32 0.0, %v270
    %v272 = vpop.f32.mrf.mxu0
    %273 = vdwg.mxu0
    %v275 = vunpack.c.l.b16 %v242
    %v276 = vpack.c.b16 %v275, %v275
    %277 = vrot.lane.b32.xlu0 %v276, 120
    %v278 = vpop.permute.xlu0 %277
    %v280 = vsel %vm254, %v242, 0
    %v283 = vsel %vm254, %v278, 0
    %285 = vmatpush.bf16.xpose.msra.mxu0 0
    %286 = vmatpush.bf16.xpose.msra.mxu0 0
    %287 = vmatpush.bf16.xpose.msra.mxu0 0
    %288 = vmatpush.bf16.xpose.msra.mxu0 0
    %289 = vmatpush.bf16.xpose.msra.mxu0 0
    %290 = vmatpush.bf16.xpose.msra.mxu0 0
    %291 = vmatpush.bf16.xpose.msra.mxu0 0
    %292 = vmatpush.bf16.xpose.msra.mxu0 %v283
    %293 = vmatmul.bf16.gmra.mxu0 %v280
    %v294 = vpop.f32.mrf.mxu0
    %v295 = vadd.f32 0.0, %v294
    %v296 = vpop.f32.mrf.mxu0
    %297 = vdwg.mxu0
    %v299 = vunpack.c.l.b16 %v243
    %v300 = vpack.c.b16 %v299, %v299
    %301 = vrot.lane.b32.xlu0 %v300, 120
    %v302 = vpop.permute.xlu0 %301
    %v304 = vsel %vm254, %v243, 0
    %v307 = vsel %vm254, %v302, 0
    %309 = vmatpush.bf16.xpose.msra.mxu0 0
    %310 = vmatpush.bf16.xpose.msra.mxu0 0
    %311 = vmatpush.bf16.xpose.msra.mxu0 0
    %312 = vmatpush.bf16.xpose.msra.mxu0 0
    %313 = vmatpush.bf16.xpose.msra.mxu0 0
    %314 = vmatpush.bf16.xpose.msra.mxu0 0
    %315 = vmatpush.bf16.xpose.msra.mxu0 0
    %316 = vmatpush.bf16.xpose.msra.mxu0 %v307
    %317 = vmatmul.bf16.gmra.mxu0 %v304
    %v318 = vpop.f32.mrf.mxu0
    %v319 = vadd.f32 0.0, %v318
    %v320 = vpop.f32.mrf.mxu0
    %321 = vdwg.mxu0
    %v323 = vunpack.c.l.b16 %v244
    %v324 = vpack.c.b16 %v323, %v323
    %325 = vrot.lane.b32.xlu0 %v324, 120
    %v326 = vpop.permute.xlu0 %325
    %v328 = vsel %vm254, %v244, 0
    %v331 = vsel %vm254, %v326, 0
    %333 = vmatpush.bf16.xpose.msra.mxu0 0
    %334 = vmatpush.bf16.xpose.msra.mxu0 0
    %335 = vmatpush.bf16.xpose.msra.mxu0 0
    %336 = vmatpush.bf16.xpose.msra.mxu0 0
    %337 = vmatpush.bf16.xpose.msra.mxu0 0
    %338 = vmatpush.bf16.xpose.msra.mxu0 0
    %339 = vmatpush.bf16.xpose.msra.mxu0 0
    %340 = vmatpush.bf16.xpose.msra.mxu0 %v331
    %341 = vmatmul.bf16.gmra.mxu0 %v328
    %v342 = vpop.f32.mrf.mxu0
    %v343 = vadd.f32 0.0, %v342
    %v344 = vpop.f32.mrf.mxu0
    %345 = vdwg.mxu0
    %v347 = vunpack.c.l.b16 %v245
    %v348 = vpack.c.b16 %v347, %v347
    %349 = vrot.lane.b32.xlu0 %v348, 120
    %v350 = vpop.permute.xlu0 %349
    %v352 = vsel %vm254, %v245, 0
    %v355 = vsel %vm254, %v350, 0
    %357 = vmatpush.bf16.xpose.msra.mxu0 0
    %358 = vmatpush.bf16.xpose.msra.mxu0 0
    %359 = vmatpush.bf16.xpose.msra.mxu0 0
    %360 = vmatpush.bf16.xpose.msra.mxu0 0
    %361 = vmatpush.bf16.xpose.msra.mxu0 0
    %362 = vmatpush.bf16.xpose.msra.mxu0 0
    %363 = vmatpush.bf16.xpose.msra.mxu0 0
    %364 = vmatpush.bf16.xpose.msra.mxu0 %v355
    %365 = vmatmul.bf16.gmra.mxu0 %v352
    %v366 = vpop.f32.mrf.mxu0
    %v367 = vadd.f32 0.0, %v366
    %v368 = vpop.f32.mrf.mxu0
    %369 = vdwg.mxu0
    %v371 = vunpack.c.l.b16 %v246
    %v372 = vpack.c.b16 %v371, %v371
    %373 = vrot.lane.b32.xlu0 %v372, 120
    %v374 = vpop.permute.xlu0 %373
    %v376 = vsel %vm254, %v246, 0
    %v379 = vsel %vm254, %v374, 0
    %381 = vmatpush.bf16.xpose.msra.mxu0 0
    %382 = vmatpush.bf16.xpose.msra.mxu0 0
    %383 = vmatpush.bf16.xpose.msra.mxu0 0
    %384 = vmatpush.bf16.xpose.msra.mxu0 0
    %385 = vmatpush.bf16.xpose.msra.mxu0 0
    %386 = vmatpush.bf16.xpose.msra.mxu0 0
    %387 = vmatpush.bf16.xpose.msra.mxu0 0
    %388 = vmatpush.bf16.xpose.msra.mxu0 %v379
    %389 = vmatmul.bf16.gmra.mxu0 %v376
    %v390 = vpop.f32.mrf.mxu0
    %v391 = vadd.f32 0.0, %v390
    %v392 = vpop.f32.mrf.mxu0
    %393 = vdwg.mxu0
    %v395 = vunpack.c.l.b16 %v247
    %v396 = vpack.c.b16 %v395, %v395
    %397 = vrot.lane.b32.xlu0 %v396, 120
    %v398 = vpop.permute.xlu0 %397
    %v400 = vsel %vm254, %v247, 0
    %v403 = vsel %vm254, %v398, 0
    %405 = vmatpush.bf16.xpose.msra.mxu0 0
    %406 = vmatpush.bf16.xpose.msra.mxu0 0
    %407 = vmatpush.bf16.xpose.msra.mxu0 0
    %408 = vmatpush.bf16.xpose.msra.mxu0 0
    %409 = vmatpush.bf16.xpose.msra.mxu0 0
    %410 = vmatpush.bf16.xpose.msra.mxu0 0
    %411 = vmatpush.bf16.xpose.msra.mxu0 0
    %412 = vmatpush.bf16.xpose.msra.mxu0 %v403
    %413 = vmatmul.bf16.gmra.mxu0 %v400
    %v414 = vpop.f32.mrf.mxu0
    %v415 = vadd.f32 0.0, %v414
    %v416 = vpop.f32.mrf.mxu0
    %417 = vdwg.mxu0
    %v419 = vunpack.c.l.b16 %v248
    %v420 = vpack.c.b16 %v419, %v419
    %421 = vrot.lane.b32.xlu0 %v420, 120
    %v422 = vpop.permute.xlu0 %421
    %v424 = vsel %vm254, %v248, 0
    %v427 = vsel %vm254, %v422, 0
    %429 = vmatpush.bf16.xpose.msra.mxu0 0
    %430 = vmatpush.bf16.xpose.msra.mxu0 0
    %431 = vmatpush.bf16.xpose.msra.mxu0 0
    %432 = vmatpush.bf16.xpose.msra.mxu0 0
    %433 = vmatpush.bf16.xpose.msra.mxu0 0
    %434 = vmatpush.bf16.xpose.msra.mxu0 0
    %435 = vmatpush.bf16.xpose.msra.mxu0 0
    %436 = vmatpush.bf16.xpose.msra.mxu0 %v427
    %437 = vmatmul.bf16.gmra.mxu0 %v424
    %v438 = vpop.f32.mrf.mxu0
    %v439 = vadd.f32 0.0, %v438
    %v440 = vpop.f32.mrf.mxu0
    %441 = vdwg.mxu0
    %v442 = vsel %vm254, %v271, -inf
    %443 = vmax.xlane.f32.xlu0 %v442
    %v444 = vpop.xlane.xlu0 %443
    %v445 = vsel %vm254, %v295, -inf
    %446 = vmax.xlane.f32.xlu0 %v445
    %v447 = vpop.xlane.xlu0 %446
    %v448 = vsel %vm254, %v319, -inf
    %449 = vmax.xlane.f32.xlu0 %v448
    %v450 = vpop.xlane.xlu0 %449
    %v451 = vsel %vm254, %v343, -inf
    %452 = vmax.xlane.f32.xlu0 %v451
    %v453 = vpop.xlane.xlu0 %452
    %v454 = vsel %vm254, %v367, -inf
    %455 = vmax.xlane.f32.xlu0 %v454
    %v456 = vpop.xlane.xlu0 %455
    %v457 = vsel %vm254, %v391, -inf
    %458 = vmax.xlane.f32.xlu0 %v457
    %v459 = vpop.xlane.xlu0 %458
    %v460 = vsel %vm254, %v415, -inf
    %461 = vmax.xlane.f32.xlu0 %v460
    %v462 = vpop.xlane.xlu0 %461
    %v463 = vsel %vm254, %v439, -inf
    %464 = vmax.xlane.f32.xlu0 %v463
    %v465 = vpop.xlane.xlu0 %464
    %v466 = vsub.f32 %v271, %v444
    %v467 = vsub.f32 %v295, %v447
    %v468 = vsub.f32 %v319, %v450
    %v469 = vsub.f32 %v343, %v453
    %v470 = vsub.f32 %v367, %v456
    %v471 = vsub.f32 %v391, %v459
    %v472 = vsub.f32 %v415, %v462
    %v473 = vsub.f32 %v439, %v465
    %v474 = vmul.f32 %v466, 1.442695
    %v475 = vpow.pop %v474
    %v476 = vmul.f32 %v467, 1.442695
    %v477 = vpow.pop %v476
    %v478 = vmul.f32 %v468, 1.442695
    %v479 = vpow.pop %v478
    %v480 = vmul.f32 %v469, 1.442695
    %v481 = vpow.pop %v480
    %v482 = vmul.f32 %v470, 1.442695
    %v483 = vpow.pop %v482
    %v484 = vmul.f32 %v471, 1.442695
    %v485 = vpow.pop %v484
    %v486 = vmul.f32 %v472, 1.442695
    %v487 = vpow.pop %v486
    %v488 = vmul.f32 %v473, 1.442695
    %v489 = vpow.pop %v488
    %v490 = vsel %vm254, %v475, 0.0
    %491 = vadd.xlane.f32.xlu0 %v490
    %v492 = vpop.xlane.xlu0 %491
    %v493 = vsel %vm254, %v477, 0.0
    %494 = vadd.xlane.f32.xlu0 %v493
    %v495 = vpop.xlane.xlu0 %494
    %v496 = vsel %vm254, %v479, 0.0
    %497 = vadd.xlane.f32.xlu0 %v496
    %v498 = vpop.xlane.xlu0 %497
    %v499 = vsel %vm254, %v481, 0.0
    %500 = vadd.xlane.f32.xlu0 %v499
    %v501 = vpop.xlane.xlu0 %500
    %v502 = vsel %vm254, %v483, 0.0
    %503 = vadd.xlane.f32.xlu0 %v502
    %v504 = vpop.xlane.xlu0 %503
    %v505 = vsel %vm254, %v485, 0.0
    %506 = vadd.xlane.f32.xlu0 %v505
    %v507 = vpop.xlane.xlu0 %506
    %v508 = vsel %vm254, %v487, 0.0
    %509 = vadd.xlane.f32.xlu0 %v508
    %v510 = vpop.xlane.xlu0 %509
    %v511 = vsel %vm254, %v489, 0.0
    %512 = vadd.xlane.f32.xlu0 %v511
    %v513 = vpop.xlane.xlu0 %512
    %v514 = vrcp.pop %v492
    %v515 = vrcp.pop %v495
    %v516 = vrcp.pop %v498
    %v517 = vrcp.pop %v501
    %v518 = vrcp.pop %v504
    %v519 = vrcp.pop %v507
    %v520 = vrcp.pop %v510
    %v521 = vrcp.pop %v513
    %v522 = vmul.f32 %v475, %v514
    %v523 = vmul.f32 %v477, %v515
    %v524 = vmul.f32 %v479, %v516
    %v525 = vmul.f32 %v481, %v517
    %v526 = vmul.f32 %v483, %v518
    %v527 = vmul.f32 %v485, %v519
    %v528 = vmul.f32 %v487, %v520
    %v529 = vmul.f32 %v489, %v521
    %v530 = vpack.c.bf16 %v522, %v522
    %v531 = vpack.c.bf16 %v523, %v523
    %v532 = vpack.c.bf16 %v524, %v524
    %v533 = vpack.c.bf16 %v525, %v525
    %v534 = vpack.c.bf16 %v526, %v526
    %v535 = vpack.c.bf16 %v527, %v527
    %v536 = vpack.c.bf16 %v528, %v528
    %v537 = vpack.c.bf16 %v529, %v529
    %538 = vrot.lane.b32.xlu0 %v251, 112
    %v539 = vpop.permute.xlu0 %538
    %v541 = vsel %vm254, %v530, 0
    %vm543 = vcmask 1043456
    %v545 = vsel %vm543, %v539, 0
    %547 = vmatpush.bf16.msra.mxu0 0
    %548 = vmatpush.bf16.msra.mxu0 0
    %549 = vmatpush.bf16.msra.mxu0 0
    %550 = vmatpush.bf16.msra.mxu0 0
    %551 = vmatpush.bf16.msra.mxu0 0
    %552 = vmatpush.bf16.msra.mxu0 0
    %553 = vmatpush.bf16.msra.mxu0 0
    %554 = vmatpush.bf16.msra.mxu0 %v545
    %555 = vmatmul.bf16.gmra.mxu0 %v541
    %v556 = vpop.f32.mrf.mxu0
    %v557 = vadd.f32 0.0, %v556
    %v558 = vpop.f32.mrf.mxu0
    %559 = vdwg.mxu0
    %560 = vrot.lane.b32.xlu0 %v276, 112
    %v561 = vpop.permute.xlu0 %560
    %v563 = vsel %vm254, %v531, 0
    %v566 = vsel %vm543, %v561, 0
    %568 = vmatpush.bf16.msra.mxu0 0
    %569 = vmatpush.bf16.msra.mxu0 0
    %570 = vmatpush.bf16.msra.mxu0 0
    %571 = vmatpush.bf16.msra.mxu0 0
    %572 = vmatpush.bf16.msra.mxu0 0
    %573 = vmatpush.bf16.msra.mxu0 0
    %574 = vmatpush.bf16.msra.mxu0 0
    %575 = vmatpush.bf16.msra.mxu0 %v566
    %576 = vmatmul.bf16.gmra.mxu0 %v563
    %v577 = vpop.f32.mrf.mxu0
    %v578 = vadd.f32 0.0, %v577
    %v579 = vpop.f32.mrf.mxu0
    %580 = vdwg.mxu0
    %581 = vrot.lane.b32.xlu0 %v300, 112
    %v582 = vpop.permute.xlu0 %581
    %v584 = vsel %vm254, %v532, 0
    %v587 = vsel %vm543, %v582, 0
    %589 = vmatpush.bf16.msra.mxu0 0
    %590 = vmatpush.bf16.msra.mxu0 0
    %591 = vmatpush.bf16.msra.mxu0 0
    %592 = vmatpush.bf16.msra.mxu0 0
    %593 = vmatpush.bf16.msra.mxu0 0
    %594 = vmatpush.bf16.msra.mxu0 0
    %595 = vmatpush.bf16.msra.mxu0 0
    %596 = vmatpush.bf16.msra.mxu0 %v587
    %597 = vmatmul.bf16.gmra.mxu0 %v584
    %v598 = vpop.f32.mrf.mxu0
    %v599 = vadd.f32 0.0, %v598
    %v600 = vpop.f32.mrf.mxu0
    %601 = vdwg.mxu0
    %602 = vrot.lane.b32.xlu0 %v324, 112
    %v603 = vpop.permute.xlu0 %602
    %v605 = vsel %vm254, %v533, 0
    %v608 = vsel %vm543, %v603, 0
    %610 = vmatpush.bf16.msra.mxu0 0
    %611 = vmatpush.bf16.msra.mxu0 0
    %612 = vmatpush.bf16.msra.mxu0 0
    %613 = vmatpush.bf16.msra.mxu0 0
    %614 = vmatpush.bf16.msra.mxu0 0
    %615 = vmatpush.bf16.msra.mxu0 0
    %616 = vmatpush.bf16.msra.mxu0 0
    %617 = vmatpush.bf16.msra.mxu0 %v608
    %618 = vmatmul.bf16.gmra.mxu0 %v605
    %v619 = vpop.f32.mrf.mxu0
    %v620 = vadd.f32 0.0, %v619
    %v621 = vpop.f32.mrf.mxu0
    %622 = vdwg.mxu0
    %623 = vrot.lane.b32.xlu0 %v348, 112
    %v624 = vpop.permute.xlu0 %623
    %v626 = vsel %vm254, %v534, 0
    %v629 = vsel %vm543, %v624, 0
    %631 = vmatpush.bf16.msra.mxu0 0
    %632 = vmatpush.bf16.msra.mxu0 0
    %633 = vmatpush.bf16.msra.mxu0 0
    %634 = vmatpush.bf16.msra.mxu0 0
    %635 = vmatpush.bf16.msra.mxu0 0
    %636 = vmatpush.bf16.msra.mxu0 0
    %637 = vmatpush.bf16.msra.mxu0 0
    %638 = vmatpush.bf16.msra.mxu0 %v629
    %639 = vmatmul.bf16.gmra.mxu0 %v626
    %v640 = vpop.f32.mrf.mxu0
    %v641 = vadd.f32 0.0, %v640
    %v642 = vpop.f32.mrf.mxu0
    %643 = vdwg.mxu0
    %644 = vrot.lane.b32.xlu0 %v372, 112
    %v645 = vpop.permute.xlu0 %644
    %v647 = vsel %vm254, %v535, 0
    %v650 = vsel %vm543, %v645, 0
    %652 = vmatpush.bf16.msra.mxu0 0
    %653 = vmatpush.bf16.msra.mxu0 0
    %654 = vmatpush.bf16.msra.mxu0 0
    %655 = vmatpush.bf16.msra.mxu0 0
    %656 = vmatpush.bf16.msra.mxu0 0
    %657 = vmatpush.bf16.msra.mxu0 0
    %658 = vmatpush.bf16.msra.mxu0 0
    %659 = vmatpush.bf16.msra.mxu0 %v650
    %660 = vmatmul.bf16.gmra.mxu0 %v647
    %v661 = vpop.f32.mrf.mxu0
    %v662 = vadd.f32 0.0, %v661
    %v663 = vpop.f32.mrf.mxu0
    %664 = vdwg.mxu0
    %665 = vrot.lane.b32.xlu0 %v396, 112
    %v666 = vpop.permute.xlu0 %665
    %v668 = vsel %vm254, %v536, 0
    %v671 = vsel %vm543, %v666, 0
    %673 = vmatpush.bf16.msra.mxu0 0
    %674 = vmatpush.bf16.msra.mxu0 0
    %675 = vmatpush.bf16.msra.mxu0 0
    %676 = vmatpush.bf16.msra.mxu0 0
    %677 = vmatpush.bf16.msra.mxu0 0
    %678 = vmatpush.bf16.msra.mxu0 0
    %679 = vmatpush.bf16.msra.mxu0 0
    %680 = vmatpush.bf16.msra.mxu0 %v671
    %681 = vmatmul.bf16.gmra.mxu0 %v668
    %v682 = vpop.f32.mrf.mxu0
    %v683 = vadd.f32 0.0, %v682
    %v684 = vpop.f32.mrf.mxu0
    %685 = vdwg.mxu0
    %686 = vrot.lane.b32.xlu0 %v420, 112
    %v687 = vpop.permute.xlu0 %686
    %v689 = vsel %vm254, %v537, 0
    %v692 = vsel %vm543, %v687, 0
    %694 = vmatpush.bf16.msra.mxu0 0
    %695 = vmatpush.bf16.msra.mxu0 0
    %696 = vmatpush.bf16.msra.mxu0 0
    %697 = vmatpush.bf16.msra.mxu0 0
    %698 = vmatpush.bf16.msra.mxu0 0
    %699 = vmatpush.bf16.msra.mxu0 0
    %700 = vmatpush.bf16.msra.mxu0 0
    %701 = vmatpush.bf16.msra.mxu0 %v692
    %702 = vmatmul.bf16.gmra.mxu0 %v689
    %v703 = vpop.f32.mrf.mxu0
    %v704 = vadd.f32 0.0, %v703
    %v705 = vpop.f32.mrf.mxu0
    %706 = vdwg.mxu0
    %709 = vrot.lane.b32.xlu0 %v599, 8
    %v710 = vpop.permute.xlu0 %709
    %711 = vrot.lane.b32.xlu0 %v620, 8
    %v712 = vpop.permute.xlu0 %711
    %717 = vrot.lane.b32.xlu0 %v641, 16
    %v718 = vpop.permute.xlu0 %717
    %719 = vrot.lane.b32.xlu0 %v662, 16
    %v720 = vpop.permute.xlu0 %719
    %725 = vrot.lane.b32.xlu0 %v683, 24
    %v726 = vpop.permute.xlu0 %725
    %727 = vrot.lane.b32.xlu0 %v704, 24
    %v728 = vpop.permute.xlu0 %727
    %v731 = vsel %vm254, %v557, %v710
    %v732 = vsel %vm254, %v578, %v712
    %vm733 = vcmask 130048
    %v734 = vsel %vm733, %v731, %v718
    %v735 = vsel %vm733, %v732, %v720
    %vm736 = vcmask 195584
    %v737 = vsel %vm736, %v734, %v726
    %v738 = vsel %vm736, %v735, %v728
    %v739 = vpack.c.bf16 %v738, %v737
    %v740 = vperm.slane %v67, 0
    %v745 = vunpack.c.l.b16 %v50
    %v746 = vunpack.c.l.b16 %v51
    %v747 = vunpack.c.l.b16 %v52
    %v748 = vunpack.c.l.b16 %v53
    %v749 = vpack.c.b16 %v746, %v745
    %v750 = vpack.c.b16 %v748, %v747
    %v754 = vsel %vm94, %v739, 0
    %756 = vmatpush.bf16.msra.mxu0 0
    %757 = vmatpush.bf16.msra.mxu0 0
    %758 = vmatpush.bf16.msra.mxu0 0
    %759 = vmatpush.bf16.msra.mxu0 0
    %760 = vmatpush.bf16.msra.mxu0 0
    %761 = vmatpush.bf16.msra.mxu0 0
    %762 = vmatpush.bf16.msra.mxu0 %v750
    %763 = vmatpush.bf16.msra.mxu0 %v749
    %764 = vmatmul.bf16.gmra.mxu0 %v754
    %v765 = vpop.f32.mrf.mxu0
    %v766 = vadd.f32 %v740, %v765
    %v767 = vpop.f32.mrf.mxu0
    %v768 = vadd.f32 %v740, %v767
    %769 = vdwg.mxu0
    %v770 = vadd.f32 %v31, %v766
    %v771 = vadd.f32 %v32, %v768
    %v772 = vsel %vm94, %v770, 0.0
    %773 = vadd.xlane.f32.xlu0 %v772
    %v774 = vpop.xlane.xlu0 %773
    %v775 = vsel %vm94, %v771, 0.0
    %776 = vadd.xlane.f32.xlu0 %v775
    %v777 = vpop.xlane.xlu0 %776
    %v778 = vrcp.pop 32.0
    %v779 = vmul.f32 32.0, %v778
    %v780 = vsub.f32 1.0, %v779
    %v781 = vmul.f32 %v778, %v780
    %v782 = vadd.f32 %v778, %v781
    %vm783 = vweird.f32 %v778
    %v784 = vsel %vm783, %v778, %v782
    %v785 = vmul.f32 %v774, %v784
    %v786 = vmul.f32 %v777, %v784
    %v787 = vsub.f32 %v770, %v785
    %v788 = vsub.f32 %v771, %v786
    %v789 = vmul.f32 %v787, %v787
    %v790 = vmul.f32 %v788, %v788
    %v791 = vsel %vm94, %v789, 0.0
    %792 = vadd.xlane.f32.xlu0 %v791
    %v793 = vpop.xlane.xlu0 %792
    %v794 = vsel %vm94, %v790, 0.0
    %795 = vadd.xlane.f32.xlu0 %v794
    %v796 = vpop.xlane.xlu0 %795
    %v797 = vmul.f32 %v793, %v784
    %v798 = vmul.f32 %v796, %v784
    %v799 = vadd.f32 %v797, 1e-12
    %v800 = vadd.f32 %v798, 1e-12
    %v801 = vrsqrt.pop %v799
    %v802 = vmul.f32 %v801, %v799
    %v803 = vmul.f32 %v802, %v801
    %v804 = vmul.f32 0.5, %v803
    %v805 = vsub.f32 1.5, %v804
    %v806 = vmul.f32 %v801, %v805
    %vm807 = vweird.f32 %v799
    %vm808 = vweird.f32 %v801
    %vm809 = vmor %vm807, %vm808
    %v810 = vsel %vm809, %v801, %v806
    %v811 = vrsqrt.pop %v800
    %v812 = vmul.f32 %v811, %v800
    %v813 = vmul.f32 %v812, %v811
    %v814 = vmul.f32 0.5, %v813
    %v815 = vsub.f32 1.5, %v814
    %v816 = vmul.f32 %v811, %v815
    %vm817 = vweird.f32 %v800
    %vm818 = vweird.f32 %v811
    %vm819 = vmor %vm817, %vm818
    %v820 = vsel %vm819, %v811, %v816
    %v821 = vmul.f32 %v787, %v810
    %v822 = vmul.f32 %v788, %v820
    %v823 = vperm.slane %v67, 1
    %v824 = vmul.f32 %v821, %v823
    %v825 = vmul.f32 %v822, %v823
    %v826 = vperm.slane %v67, 2
    %v827 = vadd.f32 %v824, %v826
    %v828 = vadd.f32 %v825, %v826
    %v829 = vpack.c.bf16 %v828, %v827
    %v831 = vperm.slane %v66, 0
    %v837 = vunpack.c.l.b16 %v54
    %v838 = vunpack.c.l.b16 %v55
    %v839 = vunpack.c.l.b16 %v56
    %v840 = vunpack.c.l.b16 %v57
    %v841 = vpack.c.b16 %v838, %v837
    %v842 = vpack.c.b16 %v840, %v839
    %v846 = vsel %vm94, %v829, 0
    %848 = vmatpush.bf16.msra.mxu0 0
    %849 = vmatpush.bf16.msra.mxu0 0
    %850 = vmatpush.bf16.msra.mxu0 0
    %851 = vmatpush.bf16.msra.mxu0 0
    %852 = vmatpush.bf16.msra.mxu0 0
    %853 = vmatpush.bf16.msra.mxu0 0
    %854 = vmatpush.bf16.msra.mxu0 %v842
    %855 = vmatpush.bf16.msra.mxu0 %v841
    %856 = vmatmul.bf16.gmra.mxu0 %v846
    %v857 = vpop.f32.mrf.mxu0
    %v858 = vadd.f32 %v831, %v857
    %v859 = vpop.f32.mrf.mxu0
    %v860 = vadd.f32 %v831, %v859
    %861 = vdwg.mxu0
    %v862 = vmul.f32 %v858, 0.5
    %v863 = vmul.f32 %v860, 0.5
    %v864 = vmul.f32 %v858, 0.044715
    %v865 = vmul.f32 %v860, 0.044715
    %v866 = vmul.f32 %v864, %v858
    %v867 = vmul.f32 %v865, %v860
    %v868 = vmul.f32 %v866, %v858
    %v869 = vmul.f32 %v867, %v860
    %v870 = vadd.f32 %v858, %v868
    %v871 = vadd.f32 %v860, %v869
    %v872 = vmul.f32 %v870, 0.7978846
    %v873 = vmul.f32 %v871, 0.7978846
    %v874 = vtanh.pop %v872
    %v875 = vtanh.pop %v873
    %v876 = vadd.f32 %v874, 1.0
    %v877 = vadd.f32 %v875, 1.0
    %v878 = vmul.f32 %v862, %v876
    %v879 = vmul.f32 %v863, %v877
    %v880 = vpack.c.bf16 %v879, %v878
    %v881 = vperm.slane %v67, 3
    %v890 = vunpack.c.l.b16 %v58
    %v891 = vunpack.c.l.b16 %v59
    %v892 = vunpack.c.l.b16 %v60
    %v893 = vunpack.c.l.b16 %v61
    %v894 = vunpack.c.l.b16 %v62
    %v895 = vunpack.c.l.b16 %v63
    %v896 = vunpack.c.l.b16 %v64
    %v897 = vunpack.c.l.b16 %v65
    %v898 = vpack.c.b16 %v891, %v890
    %v899 = vpack.c.b16 %v893, %v892
    %v900 = vpack.c.b16 %v895, %v894
    %v901 = vpack.c.b16 %v897, %v896
    %vm906 = vcmask 523264
    %v908 = vsel %vm906, %v880, 0
    %910 = vmatpush.bf16.msra.mxu0 0
    %911 = vmatpush.bf16.msra.mxu0 0
    %912 = vmatpush.bf16.msra.mxu0 0
    %913 = vmatpush.bf16.msra.mxu0 0
    %914 = vmatpush.bf16.msra.mxu0 %v901
    %915 = vmatpush.bf16.msra.mxu0 %v900
    %916 = vmatpush.bf16.msra.mxu0 %v899
    %917 = vmatpush.bf16.msra.mxu0 %v898
    %918 = vmatmul.bf16.gmra.mxu0 %v908
    %v919 = vpop.f32.mrf.mxu0
    %v920 = vadd.f32 %v881, %v919
    %v921 = vpop.f32.mrf.mxu0
    %v922 = vadd.f32 %v881, %v921
    %923 = vdwg.mxu0
    %v924 = vadd.f32 %v920, %v827
    %v925 = vadd.f32 %v922, %v828
    %v926 = vsel %vm94, %v924, 0.0
    %927 = vadd.xlane.f32.xlu0 %v926
    %v928 = vpop.xlane.xlu0 %927
    %v929 = vsel %vm94, %v925, 0.0
    %930 = vadd.xlane.f32.xlu0 %v929
    %v931 = vpop.xlane.xlu0 %930
    %v932 = vmul.f32 %v928, %v784
    %v933 = vmul.f32 %v931, %v784
    %v934 = vsub.f32 %v924, %v932
    %v935 = vsub.f32 %v925, %v933
    %v936 = vmul.f32 %v934, %v934
    %v937 = vmul.f32 %v935, %v935
    %v938 = vsel %vm94, %v936, 0.0
    %939 = vadd.xlane.f32.xlu0 %v938
    %v940 = vpop.xlane.xlu0 %939
    %v941 = vsel %vm94, %v937, 0.0
    %942 = vadd.xlane.f32.xlu0 %v941
    %v943 = vpop.xlane.xlu0 %942
    %v944 = vmul.f32 %v940, %v784
    %v945 = vmul.f32 %v943, %v784
    %v946 = vadd.f32 %v944, 1e-12
    %v947 = vadd.f32 %v945, 1e-12
    %v948 = vrsqrt.pop %v946
    %v949 = vmul.f32 %v948, %v946
    %v950 = vmul.f32 %v949, %v948
    %v951 = vmul.f32 0.5, %v950
    %v952 = vsub.f32 1.5, %v951
    %v953 = vmul.f32 %v948, %v952
    %vm954 = vweird.f32 %v946
    %vm955 = vweird.f32 %v948
    %vm956 = vmor %vm954, %vm955
    %v957 = vsel %vm956, %v948, %v953
    %v958 = vrsqrt.pop %v947
    %v959 = vmul.f32 %v958, %v947
    %v960 = vmul.f32 %v959, %v958
    %v961 = vmul.f32 0.5, %v960
    %v962 = vsub.f32 1.5, %v961
    %v963 = vmul.f32 %v958, %v962
    %vm964 = vweird.f32 %v947
    %vm965 = vweird.f32 %v958
    %vm966 = vmor %vm964, %vm965
    %v967 = vsel %vm966, %v958, %v963
    %v968 = vmul.f32 %v934, %v957
    %v969 = vmul.f32 %v935, %v967
    %v970 = vperm.slane %v67, 4
    %v971 = vmul.f32 %v968, %v970
    %v972 = vmul.f32 %v969, %v970
    %v973 = vperm.slane %v67, 5
    %v974 = vadd.f32 %v971, %v973
    %v975 = vadd.f32 %v972, %v973
    %s976 = scalar_lea.vmem %s1, 64
    %v977 = vld [vmem:[%s976] sm:$0xf]
    %v978 = vld [vmem:[%s976 + $0x4] sm:$0xf]
    %v979 = vld [vmem:[%s976 + $0x8] sm:$0xf]
    %v980 = vld [vmem:[%s976 + $0xc] sm:$0xf]
    %v981 = vld [vmem:[%s976 + $0x10] sm:$0xf]
    %v982 = vld [vmem:[%s976 + $0x14] sm:$0xf]
    %v983 = vld [vmem:[%s976 + $0x18] sm:$0xf]
    %v984 = vld [vmem:[%s976 + $0x1c] sm:$0xf]
    %v985 = vld [vmem:[%s976 + $0x20] sm:$0xf]
    %v986 = vld [vmem:[%s976 + $0x24] sm:$0xf]
    %v987 = vld [vmem:[%s976 + $0x28] sm:$0xf]
    %v988 = vld [vmem:[%s976 + $0x2c] sm:$0xf]
    %v989 = vld [vmem:[%s976 + $0x30] sm:$0xf]
    %v990 = vld [vmem:[%s976 + $0x34] sm:$0xf]
    %v991 = vld [vmem:[%s976 + $0x38] sm:$0xf]
    %v992 = vld [vmem:[%s976 + $0x3c] sm:$0xf]
    %s993 = scalar_lea.vmem %s5, 4
    %v994 = vld [vmem:[%s993] sm:$0xf]
    %s995 = scalar_lea.vmem %s2, 16
    %v996 = vld [vmem:[%s995] sm:$0xf]
    %v997 = vld [vmem:[%s995 + $0x4] sm:$0xf]
    %v998 = vld [vmem:[%s995 + $0x8] sm:$0xf]
    %v999 = vld [vmem:[%s995 + $0xc] sm:$0xf]
    %s1000 = scalar_lea.vmem %s3, 16
    %v1001 = vld [vmem:[%s1000] sm:$0xf]
    %v1002 = vld [vmem:[%s1000 + $0x4] sm:$0xf]
    %v1003 = vld [vmem:[%s1000 + $0x8] sm:$0xf]
    %v1004 = vld [vmem:[%s1000 + $0xc] sm:$0xf]
    %s1005 = scalar_lea.vmem %s4, 32
    %v1006 = vld [vmem:[%s1005] sm:$0xf]
    %v1007 = vld [vmem:[%s1005 + $0x4] sm:$0xf]
    %v1008 = vld [vmem:[%s1005 + $0x8] sm:$0xf]
    %v1009 = vld [vmem:[%s1005 + $0xc] sm:$0xf]
    %v1010 = vld [vmem:[%s1005 + $0x10] sm:$0xf]
    %v1011 = vld [vmem:[%s1005 + $0x14] sm:$0xf]
    %v1012 = vld [vmem:[%s1005 + $0x18] sm:$0xf]
    %v1013 = vld [vmem:[%s1005 + $0x1c] sm:$0xf]
    %s1014 = scalar_lea.vmem %s6, 1
    %v1015 = vld [vmem:[%s1014] sm:$0x1]
    %s1016 = scalar_lea.vmem %s7, 8
    %v1017 = vld [vmem:[%s1016] sm:$0x3f]
    %v1018 = vpack.c.bf16 %v974, %v974
    %v1019 = vpack.c.bf16 %v975, %v975
    %v1021 = vrot.slane %v994, 1
    %v1022 = vrot.slane %v994, 2
    %v1023 = vrot.slane %v994, 3
    %v1024 = vperm.slane %v994, 0
    %v1025 = vperm.slane %v1021, 0
    %v1026 = vperm.slane %v1022, 0
    %v1027 = vperm.slane %v1023, 0
    %v1036 = vunpack.c.l.b16 %v977
    %v1037 = vunpack.c.l.b16 %v978
    %v1038 = vunpack.c.l.b16 %v979
    %v1039 = vunpack.c.l.b16 %v980
    %v1040 = vpack.c.b16 %v1037, %v1036
    %v1041 = vpack.c.b16 %v1039, %v1038
    %v1045 = vsel %vm94, %v1018, 0
    %1047 = vmatpush.bf16.msra.mxu0 0
    %1048 = vmatpush.bf16.msra.mxu0 0
    %1049 = vmatpush.bf16.msra.mxu0 0
    %1050 = vmatpush.bf16.msra.mxu0 0
    %1051 = vmatpush.bf16.msra.mxu0 0
    %1052 = vmatpush.bf16.msra.mxu0 0
    %1053 = vmatpush.bf16.msra.mxu0 %v1041
    %1054 = vmatpush.bf16.msra.mxu0 %v1040
    %1055 = vmatmul.bf16.gmra.mxu0 %v1045
    %v1056 = vpop.f32.mrf.mxu0
    %v1057 = vadd.f32 %v1024, %v1056
    %v1058 = vpop.f32.mrf.mxu0
    %1059 = vdwg.mxu0
    %v1061 = vsel %vm94, %v1019, 0
    %1063 = vmatpush.bf16.msra.mxu0 0
    %1064 = vmatpush.bf16.msra.mxu0 0
    %1065 = vmatpush.bf16.msra.mxu0 0
    %1066 = vmatpush.bf16.msra.mxu0 0
    %1067 = vmatpush.bf16.msra.mxu0 0
    %1068 = vmatpush.bf16.msra.mxu0 0
    %1069 = vmatpush.bf16.msra.mxu0 %v1041
    %1070 = vmatpush.bf16.msra.mxu0 %v1040
    %1071 = vmatmul.bf16.gmra.mxu0 %v1061
    %v1072 = vpop.f32.mrf.mxu0
    %v1073 = vadd.f32 %v1024, %v1072
    %v1074 = vpop.f32.mrf.mxu0
    %1075 = vdwg.mxu0
    %v1080 = vunpack.c.l.b16 %v981
    %v1081 = vunpack.c.l.b16 %v982
    %v1082 = vunpack.c.l.b16 %v983
    %v1083 = vunpack.c.l.b16 %v984
    %v1084 = vpack.c.b16 %v1081, %v1080
    %v1085 = vpack.c.b16 %v1083, %v1082
    %1088 = vmatpush.bf16.msra.mxu0 0
    %1089 = vmatpush.bf16.msra.mxu0 0
    %1090 = vmatpush.bf16.msra.mxu0 0
    %1091 = vmatpush.bf16.msra.mxu0 0
    %1092 = vmatpush.bf16.msra.mxu0 0
    %1093 = vmatpush.bf16.msra.mxu0 0
    %1094 = vmatpush.bf16.msra.mxu0 %v1085
    %1095 = vmatpush.bf16.msra.mxu0 %v1084
    %1096 = vmatmul.bf16.gmra.mxu0 %v1045
    %v1097 = vpop.f32.mrf.mxu0
    %v1098 = vadd.f32 %v1025, %v1097
    %v1099 = vpop.f32.mrf.mxu0
    %1100 = vdwg.mxu0
    %1101 = vmatpush.bf16.msra.mxu0 0
    %1102 = vmatpush.bf16.msra.mxu0 0
    %1103 = vmatpush.bf16.msra.mxu0 0
    %1104 = vmatpush.bf16.msra.mxu0 0
    %1105 = vmatpush.bf16.msra.mxu0 0
    %1106 = vmatpush.bf16.msra.mxu0 0
    %1107 = vmatpush.bf16.msra.mxu0 %v1085
    %1108 = vmatpush.bf16.msra.mxu0 %v1084
    %1109 = vmatmul.bf16.gmra.mxu0 %v1061
    %v1110 = vpop.f32.mrf.mxu0
    %v1111 = vadd.f32 %v1025, %v1110
    %v1112 = vpop.f32.mrf.mxu0
    %1113 = vdwg.mxu0
    %v1118 = vunpack.c.l.b16 %v985
    %v1119 = vunpack.c.l.b16 %v986
    %v1120 = vunpack.c.l.b16 %v987
    %v1121 = vunpack.c.l.b16 %v988
    %v1122 = vpack.c.b16 %v1119, %v1118
    %v1123 = vpack.c.b16 %v1121, %v1120
    %1126 = vmatpush.bf16.msra.mxu0 0
    %1127 = vmatpush.bf16.msra.mxu0 0
    %1128 = vmatpush.bf16.msra.mxu0 0
    %1129 = vmatpush.bf16.msra.mxu0 0
    %1130 = vmatpush.bf16.msra.mxu0 0
    %1131 = vmatpush.bf16.msra.mxu0 0
    %1132 = vmatpush.bf16.msra.mxu0 %v1123
    %1133 = vmatpush.bf16.msra.mxu0 %v1122
    %1134 = vmatmul.bf16.gmra.mxu0 %v1045
    %v1135 = vpop.f32.mrf.mxu0
    %v1136 = vadd.f32 %v1026, %v1135
    %v1137 = vpop.f32.mrf.mxu0
    %1138 = vdwg.mxu0
    %1139 = vmatpush.bf16.msra.mxu0 0
    %1140 = vmatpush.bf16.msra.mxu0 0
    %1141 = vmatpush.bf16.msra.mxu0 0
    %1142 = vmatpush.bf16.msra.mxu0 0
    %1143 = vmatpush.bf16.msra.mxu0 0
    %1144 = vmatpush.bf16.msra.mxu0 0
    %1145 = vmatpush.bf16.msra.mxu0 %v1123
    %1146 = vmatpush.bf16.msra.mxu0 %v1122
    %1147 = vmatmul.bf16.gmra.mxu0 %v1061
    %v1148 = vpop.f32.mrf.mxu0
    %v1149 = vadd.f32 %v1026, %v1148
    %v1150 = vpop.f32.mrf.mxu0
    %1151 = vdwg.mxu0
    %v1156 = vunpack.c.l.b16 %v989
    %v1157 = vunpack.c.l.b16 %v990
    %v1158 = vunpack.c.l.b16 %v991
    %v1159 = vunpack.c.l.b16 %v992
    %v1160 = vpack.c.b16 %v1157, %v1156
    %v1161 = vpack.c.b16 %v1159, %v1158
    %1164 = vmatpush.bf16.msra.mxu0 0
    %1165 = vmatpush.bf16.msra.mxu0 0
    %1166 = vmatpush.bf16.msra.mxu0 0
    %1167 = vmatpush.bf16.msra.mxu0 0
    %1168 = vmatpush.bf16.msra.mxu0 0
    %1169 = vmatpush.bf16.msra.mxu0 0
    %1170 = vmatpush.bf16.msra.mxu0 %v1161
    %1171 = vmatpush.bf16.msra.mxu0 %v1160
    %1172 = vmatmul.bf16.gmra.mxu0 %v1045
    %v1173 = vpop.f32.mrf.mxu0
    %v1174 = vadd.f32 %v1027, %v1173
    %v1175 = vpop.f32.mrf.mxu0
    %1176 = vdwg.mxu0
    %1177 = vmatpush.bf16.msra.mxu0 0
    %1178 = vmatpush.bf16.msra.mxu0 0
    %1179 = vmatpush.bf16.msra.mxu0 0
    %1180 = vmatpush.bf16.msra.mxu0 0
    %1181 = vmatpush.bf16.msra.mxu0 0
    %1182 = vmatpush.bf16.msra.mxu0 0
    %1183 = vmatpush.bf16.msra.mxu0 %v1161
    %1184 = vmatpush.bf16.msra.mxu0 %v1160
    %1185 = vmatmul.bf16.gmra.mxu0 %v1061
    %v1186 = vpop.f32.mrf.mxu0
    %v1187 = vadd.f32 %v1027, %v1186
    %v1188 = vpop.f32.mrf.mxu0
    %1189 = vdwg.mxu0
    %v1190 = vpack.c.bf16 %v1057, %v1057
    %v1191 = vpack.c.bf16 %v1073, %v1073
    %v1192 = vpack.c.bf16 %v1098, %v1098
    %v1193 = vpack.c.bf16 %v1111, %v1111
    %v1194 = vpack.c.bf16 %v1136, %v1136
    %v1195 = vpack.c.bf16 %v1149, %v1149
    %v1196 = vpack.c.bf16 %v1174, %v1174
    %v1197 = vpack.c.bf16 %v1187, %v1187
    %v1199 = vunpack.c.l.b16 %v1190
    %v1200 = vpack.c.b16 %v1199, %v1199
    %1201 = vrot.lane.b32.xlu0 %v1200, 120
    %v1202 = vpop.permute.xlu0 %1201
    %v1204 = vsel %vm254, %v1190, 0
    %v1207 = vsel %vm254, %v1202, 0
    %1209 = vmatpush.bf16.xpose.msra.mxu0 0
    %1210 = vmatpush.bf16.xpose.msra.mxu0 0
    %1211 = vmatpush.bf16.xpose.msra.mxu0 0
    %1212 = vmatpush.bf16.xpose.msra.mxu0 0
    %1213 = vmatpush.bf16.xpose.msra.mxu0 0
    %1214 = vmatpush.bf16.xpose.msra.mxu0 0
    %1215 = vmatpush.bf16.xpose.msra.mxu0 0
    %1216 = vmatpush.bf16.xpose.msra.mxu0 %v1207
    %1217 = vmatmul.bf16.gmra.mxu0 %v1204
    %v1218 = vpop.f32.mrf.mxu0
    %v1219 = vadd.f32 0.0, %v1218
    %v1220 = vpop.f32.mrf.mxu0
    %1221 = vdwg.mxu0
    %v1223 = vunpack.c.l.b16 %v1191
    %v1224 = vpack.c.b16 %v1223, %v1223
    %1225 = vrot.lane.b32.xlu0 %v1224, 120
    %v1226 = vpop.permute.xlu0 %1225
    %v1228 = vsel %vm254, %v1191, 0
    %v1231 = vsel %vm254, %v1226, 0
    %1233 = vmatpush.bf16.xpose.msra.mxu0 0
    %1234 = vmatpush.bf16.xpose.msra.mxu0 0
    %1235 = vmatpush.bf16.xpose.msra.mxu0 0
    %1236 = vmatpush.bf16.xpose.msra.mxu0 0
    %1237 = vmatpush.bf16.xpose.msra.mxu0 0
    %1238 = vmatpush.bf16.xpose.msra.mxu0 0
    %1239 = vmatpush.bf16.xpose.msra.mxu0 0
    %1240 = vmatpush.bf16.xpose.msra.mxu0 %v1231
    %1241 = vmatmul.bf16.gmra.mxu0 %v1228
    %v1242 = vpop.f32.mrf.mxu0
    %v1243 = vadd.f32 0.0, %v1242
    %v1244 = vpop.f32.mrf.mxu0
    %1245 = vdwg.mxu0
    %v1247 = vunpack.c.l.b16 %v1192
    %v1248 = vpack.c.b16 %v1247, %v1247
    %1249 = vrot.lane.b32.xlu0 %v1248, 120
    %v1250 = vpop.permute.xlu0 %1249
    %v1252 = vsel %vm254, %v1192, 0
    %v1255 = vsel %vm254, %v1250, 0
    %1257 = vmatpush.bf16.xpose.msra.mxu0 0
    %1258 = vmatpush.bf16.xpose.msra.mxu0 0
    %1259 = vmatpush.bf16.xpose.msra.mxu0 0
    %1260 = vmatpush.bf16.xpose.msra.mxu0 0
    %1261 = vmatpush.bf16.xpose.msra.mxu0 0
    %1262 = vmatpush.bf16.xpose.msra.mxu0 0
    %1263 = vmatpush.bf16.xpose.msra.mxu0 0
    %1264 = vmatpush.bf16.xpose.msra.mxu0 %v1255
    %1265 = vmatmul.bf16.gmra.mxu0 %v1252
    %v1266 = vpop.f32.mrf.mxu0
    %v1267 = vadd.f32 0.0, %v1266
    %v1268 = vpop.f32.mrf.mxu0
    %1269 = vdwg.mxu0
    %v1271 = vunpack.c.l.b16 %v1193
    %v1272 = vpack.c.b16 %v1271, %v1271
    %1273 = vrot.lane.b32.xlu0 %v1272, 120
    %v1274 = vpop.permute.xlu0 %1273
    %v1276 = vsel %vm254, %v1193, 0
    %v1279 = vsel %vm254, %v1274, 0
    %1281 = vmatpush.bf16.xpose.msra.mxu0 0
    %1282 = vmatpush.bf16.xpose.msra.mxu0 0
    %1283 = vmatpush.bf16.xpose.msra.mxu0 0
    %1284 = vmatpush.bf16.xpose.msra.mxu0 0
    %1285 = vmatpush.bf16.xpose.msra.mxu0 0
    %1286 = vmatpush.bf16.xpose.msra.mxu0 0
    %1287 = vmatpush.bf16.xpose.msra.mxu0 0
    %1288 = vmatpush.bf16.xpose.msra.mxu0 %v1279
    %1289 = vmatmul.bf16.gmra.mxu0 %v1276
    %v1290 = vpop.f32.mrf.mxu0
    %v1291 = vadd.f32 0.0, %v1290
    %v1292 = vpop.f32.mrf.mxu0
    %1293 = vdwg.mxu0
    %v1295 = vunpack.c.l.b16 %v1194
    %v1296 = vpack.c.b16 %v1295, %v1295
    %1297 = vrot.lane.b32.xlu0 %v1296, 120
    %v1298 = vpop.permute.xlu0 %1297
    %v1300 = vsel %vm254, %v1194, 0
    %v1303 = vsel %vm254, %v1298, 0
    %1305 = vmatpush.bf16.xpose.msra.mxu0 0
    %1306 = vmatpush.bf16.xpose.msra.mxu0 0
    %1307 = vmatpush.bf16.xpose.msra.mxu0 0
    %1308 = vmatpush.bf16.xpose.msra.mxu0 0
    %1309 = vmatpush.bf16.xpose.msra.mxu0 0
    %1310 = vmatpush.bf16.xpose.msra.mxu0 0
    %1311 = vmatpush.bf16.xpose.msra.mxu0 0
    %1312 = vmatpush.bf16.xpose.msra.mxu0 %v1303
    %1313 = vmatmul.bf16.gmra.mxu0 %v1300
    %v1314 = vpop.f32.mrf.mxu0
    %v1315 = vadd.f32 0.0, %v1314
    %v1316 = vpop.f32.mrf.mxu0
    %1317 = vdwg.mxu0
    %v1319 = vunpack.c.l.b16 %v1195
    %v1320 = vpack.c.b16 %v1319, %v1319
    %1321 = vrot.lane.b32.xlu0 %v1320, 120
    %v1322 = vpop.permute.xlu0 %1321
    %v1324 = vsel %vm254, %v1195, 0
    %v1327 = vsel %vm254, %v1322, 0
    %1329 = vmatpush.bf16.xpose.msra.mxu0 0
    %1330 = vmatpush.bf16.xpose.msra.mxu0 0
    %1331 = vmatpush.bf16.xpose.msra.mxu0 0
    %1332 = vmatpush.bf16.xpose.msra.mxu0 0
    %1333 = vmatpush.bf16.xpose.msra.mxu0 0
    %1334 = vmatpush.bf16.xpose.msra.mxu0 0
    %1335 = vmatpush.bf16.xpose.msra.mxu0 0
    %1336 = vmatpush.bf16.xpose.msra.mxu0 %v1327
    %1337 = vmatmul.bf16.gmra.mxu0 %v1324
    %v1338 = vpop.f32.mrf.mxu0
    %v1339 = vadd.f32 0.0, %v1338
    %v1340 = vpop.f32.mrf.mxu0
    %1341 = vdwg.mxu0
    %v1343 = vunpack.c.l.b16 %v1196
    %v1344 = vpack.c.b16 %v1343, %v1343
    %1345 = vrot.lane.b32.xlu0 %v1344, 120
    %v1346 = vpop.permute.xlu0 %1345
    %v1348 = vsel %vm254, %v1196, 0
    %v1351 = vsel %vm254, %v1346, 0
    %1353 = vmatpush.bf16.xpose.msra.mxu0 0
    %1354 = vmatpush.bf16.xpose.msra.mxu0 0
    %1355 = vmatpush.bf16.xpose.msra.mxu0 0
    %1356 = vmatpush.bf16.xpose.msra.mxu0 0
    %1357 = vmatpush.bf16.xpose.msra.mxu0 0
    %1358 = vmatpush.bf16.xpose.msra.mxu0 0
    %1359 = vmatpush.bf16.xpose.msra.mxu0 0
    %1360 = vmatpush.bf16.xpose.msra.mxu0 %v1351
    %1361 = vmatmul.bf16.gmra.mxu0 %v1348
    %v1362 = vpop.f32.mrf.mxu0
    %v1363 = vadd.f32 0.0, %v1362
    %v1364 = vpop.f32.mrf.mxu0
    %1365 = vdwg.mxu0
    %v1367 = vunpack.c.l.b16 %v1197
    %v1368 = vpack.c.b16 %v1367, %v1367
    %1369 = vrot.lane.b32.xlu0 %v1368, 120
    %v1370 = vpop.permute.xlu0 %1369
    %v1372 = vsel %vm254, %v1197, 0
    %v1375 = vsel %vm254, %v1370, 0
    %1377 = vmatpush.bf16.xpose.msra.mxu0 0
    %1378 = vmatpush.bf16.xpose.msra.mxu0 0
    %1379 = vmatpush.bf16.xpose.msra.mxu0 0
    %1380 = vmatpush.bf16.xpose.msra.mxu0 0
    %1381 = vmatpush.bf16.xpose.msra.mxu0 0
    %1382 = vmatpush.bf16.xpose.msra.mxu0 0
    %1383 = vmatpush.bf16.xpose.msra.mxu0 0
    %1384 = vmatpush.bf16.xpose.msra.mxu0 %v1375
    %1385 = vmatmul.bf16.gmra.mxu0 %v1372
    %v1386 = vpop.f32.mrf.mxu0
    %v1387 = vadd.f32 0.0, %v1386
    %v1388 = vpop.f32.mrf.mxu0
    %1389 = vdwg.mxu0
    %v1390 = vsel %vm254, %v1219, -inf
    %1391 = vmax.xlane.f32.xlu0 %v1390
    %v1392 = vpop.xlane.xlu0 %1391
    %v1393 = vsel %vm254, %v1243, -inf
    %1394 = vmax.xlane.f32.xlu0 %v1393
    %v1395 = vpop.xlane.xlu0 %1394
    %v1396 = vsel %vm254, %v1267, -inf
    %1397 = vmax.xlane.f32.xlu0 %v1396
    %v1398 = vpop.xlane.xlu0 %1397
    %v1399 = vsel %vm254, %v1291, -inf
    %1400 = vmax.xlane.f32.xlu0 %v1399
    %v1401 = vpop.xlane.xlu0 %1400
    %v1402 = vsel %vm254, %v1315, -inf
    %1403 = vmax.xlane.f32.xlu0 %v1402
    %v1404 = vpop.xlane.xlu0 %1403
    %v1405 = vsel %vm254, %v1339, -inf
    %1406 = vmax.xlane.f32.xlu0 %v1405
    %v1407 = vpop.xlane.xlu0 %1406
    %v1408 = vsel %vm254, %v1363, -inf
    %1409 = vmax.xlane.f32.xlu0 %v1408
    %v1410 = vpop.xlane.xlu0 %1409
    %v1411 = vsel %vm254, %v1387, -inf
    %1412 = vmax.xlane.f32.xlu0 %v1411
    %v1413 = vpop.xlane.xlu0 %1412
    %v1414 = vsub.f32 %v1219, %v1392
    %v1415 = vsub.f32 %v1243, %v1395
    %v1416 = vsub.f32 %v1267, %v1398
    %v1417 = vsub.f32 %v1291, %v1401
    %v1418 = vsub.f32 %v1315, %v1404
    %v1419 = vsub.f32 %v1339, %v1407
    %v1420 = vsub.f32 %v1363, %v1410
    %v1421 = vsub.f32 %v1387, %v1413
    %v1422 = vmul.f32 %v1414, 1.442695
    %v1423 = vpow.pop %v1422
    %v1424 = vmul.f32 %v1415, 1.442695
    %v1425 = vpow.pop %v1424
    %v1426 = vmul.f32 %v1416, 1.442695
    %v1427 = vpow.pop %v1426
    %v1428 = vmul.f32 %v1417, 1.442695
    %v1429 = vpow.pop %v1428
    %v1430 = vmul.f32 %v1418, 1.442695
    %v1431 = vpow.pop %v1430
    %v1432 = vmul.f32 %v1419, 1.442695
    %v1433 = vpow.pop %v1432
    %v1434 = vmul.f32 %v1420, 1.442695
    %v1435 = vpow.pop %v1434
    %v1436 = vmul.f32 %v1421, 1.442695
    %v1437 = vpow.pop %v1436
    %v1438 = vsel %vm254, %v1423, 0.0
    %1439 = vadd.xlane.f32.xlu0 %v1438
    %v1440 = vpop.xlane.xlu0 %1439
    %v1441 = vsel %vm254, %v1425, 0.0
    %1442 = vadd.xlane.f32.xlu0 %v1441
    %v1443 = vpop.xlane.xlu0 %1442
    %v1444 = vsel %vm254, %v1427, 0.0
    %1445 = vadd.xlane.f32.xlu0 %v1444
    %v1446 = vpop.xlane.xlu0 %1445
    %v1447 = vsel %vm254, %v1429, 0.0
    %1448 = vadd.xlane.f32.xlu0 %v1447
    %v1449 = vpop.xlane.xlu0 %1448
    %v1450 = vsel %vm254, %v1431, 0.0
    %1451 = vadd.xlane.f32.xlu0 %v1450
    %v1452 = vpop.xlane.xlu0 %1451
    %v1453 = vsel %vm254, %v1433, 0.0
    %1454 = vadd.xlane.f32.xlu0 %v1453
    %v1455 = vpop.xlane.xlu0 %1454
    %v1456 = vsel %vm254, %v1435, 0.0
    %1457 = vadd.xlane.f32.xlu0 %v1456
    %v1458 = vpop.xlane.xlu0 %1457
    %v1459 = vsel %vm254, %v1437, 0.0
    %1460 = vadd.xlane.f32.xlu0 %v1459
    %v1461 = vpop.xlane.xlu0 %1460
    %v1462 = vrcp.pop %v1440
    %v1463 = vrcp.pop %v1443
    %v1464 = vrcp.pop %v1446
    %v1465 = vrcp.pop %v1449
    %v1466 = vrcp.pop %v1452
    %v1467 = vrcp.pop %v1455
    %v1468 = vrcp.pop %v1458
    %v1469 = vrcp.pop %v1461
    %v1470 = vmul.f32 %v1423, %v1462
    %v1471 = vmul.f32 %v1425, %v1463
    %v1472 = vmul.f32 %v1427, %v1464
    %v1473 = vmul.f32 %v1429, %v1465
    %v1474 = vmul.f32 %v1431, %v1466
    %v1475 = vmul.f32 %v1433, %v1467
    %v1476 = vmul.f32 %v1435, %v1468
    %v1477 = vmul.f32 %v1437, %v1469
    %v1478 = vpack.c.bf16 %v1470, %v1470
    %v1479 = vpack.c.bf16 %v1471, %v1471
    %v1480 = vpack.c.bf16 %v1472, %v1472
    %v1481 = vpack.c.bf16 %v1473, %v1473
    %v1482 = vpack.c.bf16 %v1474, %v1474
    %v1483 = vpack.c.bf16 %v1475, %v1475
    %v1484 = vpack.c.bf16 %v1476, %v1476
    %v1485 = vpack.c.bf16 %v1477, %v1477
    %1486 = vrot.lane.b32.xlu0 %v1200, 112
    %v1487 = vpop.permute.xlu0 %1486
    %v1489 = vsel %vm254, %v1478, 0
    %v1492 = vsel %vm543, %v1487, 0
    %1494 = vmatpush.bf16.msra.mxu0 0
    %1495 = vmatpush.bf16.msra.mxu0 0
    %1496 = vmatpush.bf16.msra.mxu0 0
    %1497 = vmatpush.bf16.msra.mxu0 0
    %1498 = vmatpush.bf16.msra.mxu0 0
    %1499 = vmatpush.bf16.msra.mxu0 0
    %1500 = vmatpush.bf16.msra.mxu0 0
    %1501 = vmatpush.bf16.msra.mxu0 %v1492
    %1502 = vmatmul.bf16.gmra.mxu0 %v1489
    %v1503 = vpop.f32.mrf.mxu0
    %v1504 = vadd.f32 0.0, %v1503
    %v1505 = vpop.f32.mrf.mxu0
    %1506 = vdwg.mxu0
    %1507 = vrot.lane.b32.xlu0 %v1224, 112
    %v1508 = vpop.permute.xlu0 %1507
    %v1510 = vsel %vm254, %v1479, 0
    %v1513 = vsel %vm543, %v1508, 0
    %1515 = vmatpush.bf16.msra.mxu0 0
    %1516 = vmatpush.bf16.msra.mxu0 0
    %1517 = vmatpush.bf16.msra.mxu0 0
    %1518 = vmatpush.bf16.msra.mxu0 0
    %1519 = vmatpush.bf16.msra.mxu0 0
    %1520 = vmatpush.bf16.msra.mxu0 0
    %1521 = vmatpush.bf16.msra.mxu0 0
    %1522 = vmatpush.bf16.msra.mxu0 %v1513
    %1523 = vmatmul.bf16.gmra.mxu0 %v1510
    %v1524 = vpop.f32.mrf.mxu0
    %v1525 = vadd.f32 0.0, %v1524
    %v1526 = vpop.f32.mrf.mxu0
    %1527 = vdwg.mxu0
    %1528 = vrot.lane.b32.xlu0 %v1248, 112
    %v1529 = vpop.permute.xlu0 %1528
    %v1531 = vsel %vm254, %v1480, 0
    %v1534 = vsel %vm543, %v1529, 0
    %1536 = vmatpush.bf16.msra.mxu0 0
    %1537 = vmatpush.bf16.msra.mxu0 0
    %1538 = vmatpush.bf16.msra.mxu0 0
    %1539 = vmatpush.bf16.msra.mxu0 0
    %1540 = vmatpush.bf16.msra.mxu0 0
    %1541 = vmatpush.bf16.msra.mxu0 0
    %1542 = vmatpush.bf16.msra.mxu0 0
    %1543 = vmatpush.bf16.msra.mxu0 %v1534
    %1544 = vmatmul.bf16.gmra.mxu0 %v1531
    %v1545 = vpop.f32.mrf.mxu0
    %v1546 = vadd.f32 0.0, %v1545
    %v1547 = vpop.f32.mrf.mxu0
    %1548 = vdwg.mxu0
    %1549 = vrot.lane.b32.xlu0 %v1272, 112
    %v1550 = vpop.permute.xlu0 %1549
    %v1552 = vsel %vm254, %v1481, 0
    %v1555 = vsel %vm543, %v1550, 0
    %1557 = vmatpush.bf16.msra.mxu0 0
    %1558 = vmatpush.bf16.msra.mxu0 0
    %1559 = vmatpush.bf16.msra.mxu0 0
    %1560 = vmatpush.bf16.msra.mxu0 0
    %1561 = vmatpush.bf16.msra.mxu0 0
    %1562 = vmatpush.bf16.msra.mxu0 0
    %1563 = vmatpush.bf16.msra.mxu0 0
    %1564 = vmatpush.bf16.msra.mxu0 %v1555
    %1565 = vmatmul.bf16.gmra.mxu0 %v1552
    %v1566 = vpop.f32.mrf.mxu0
    %v1567 = vadd.f32 0.0, %v1566
    %v1568 = vpop.f32.mrf.mxu0
    %1569 = vdwg.mxu0
    %1570 = vrot.lane.b32.xlu0 %v1296, 112
    %v1571 = vpop.permute.xlu0 %1570
    %v1573 = vsel %vm254, %v1482, 0
    %v1576 = vsel %vm543, %v1571, 0
    %1578 = vmatpush.bf16.msra.mxu0 0
    %1579 = vmatpush.bf16.msra.mxu0 0
    %1580 = vmatpush.bf16.msra.mxu0 0
    %1581 = vmatpush.bf16.msra.mxu0 0
    %1582 = vmatpush.bf16.msra.mxu0 0
    %1583 = vmatpush.bf16.msra.mxu0 0
    %1584 = vmatpush.bf16.msra.mxu0 0
    %1585 = vmatpush.bf16.msra.mxu0 %v1576
    %1586 = vmatmul.bf16.gmra.mxu0 %v1573
    %v1587 = vpop.f32.mrf.mxu0
    %v1588 = vadd.f32 0.0, %v1587
    %v1589 = vpop.f32.mrf.mxu0
    %1590 = vdwg.mxu0
    %1591 = vrot.lane.b32.xlu0 %v1320, 112
    %v1592 = vpop.permute.xlu0 %1591
    %v1594 = vsel %vm254, %v1483, 0
    %v1597 = vsel %vm543, %v1592, 0
    %1599 = vmatpush.bf16.msra.mxu0 0
    %1600 = vmatpush.bf16.msra.mxu0 0
    %1601 = vmatpush.bf16.msra.mxu0 0
    %1602 = vmatpush.bf16.msra.mxu0 0
    %1603 = vmatpush.bf16.msra.mxu0 0
    %1604 = vmatpush.bf16.msra.mxu0 0
    %1605 = vmatpush.bf16.msra.mxu0 0
    %1606 = vmatpush.bf16.msra.mxu0 %v1597
    %1607 = vmatmul.bf16.gmra.mxu0 %v1594
    %v1608 = vpop.f32.mrf.mxu0
    %v1609 = vadd.f32 0.0, %v1608
    %v1610 = vpop.f32.mrf.mxu0
    %1611 = vdwg.mxu0
    %1612 = vrot.lane.b32.xlu0 %v1344, 112
    %v1613 = vpop.permute.xlu0 %1612
    %v1615 = vsel %vm254, %v1484, 0
    %v1618 = vsel %vm543, %v1613, 0
    %1620 = vmatpush.bf16.msra.mxu0 0
    %1621 = vmatpush.bf16.msra.mxu0 0
    %1622 = vmatpush.bf16.msra.mxu0 0
    %1623 = vmatpush.bf16.msra.mxu0 0
    %1624 = vmatpush.bf16.msra.mxu0 0
    %1625 = vmatpush.bf16.msra.mxu0 0
    %1626 = vmatpush.bf16.msra.mxu0 0
    %1627 = vmatpush.bf16.msra.mxu0 %v1618
    %1628 = vmatmul.bf16.gmra.mxu0 %v1615
    %v1629 = vpop.f32.mrf.mxu0
    %v1630 = vadd.f32 0.0, %v1629
    %v1631 = vpop.f32.mrf.mxu0
    %1632 = vdwg.mxu0
    %1633 = vrot.lane.b32.xlu0 %v1368, 112
    %v1634 = vpop.permute.xlu0 %1633
    %v1636 = vsel %vm254, %v1485, 0
    %v1639 = vsel %vm543, %v1634, 0
    %1641 = vmatpush.bf16.msra.mxu0 0
    %1642 = vmatpush.bf16.msra.mxu0 0
    %1643 = vmatpush.bf16.msra.mxu0 0
    %1644 = vmatpush.bf16.msra.mxu0 0
    %1645 = vmatpush.bf16.msra.mxu0 0
    %1646 = vmatpush.bf16.msra.mxu0 0
    %1647 = vmatpush.bf16.msra.mxu0 0
    %1648 = vmatpush.bf16.msra.mxu0 %v1639
    %1649 = vmatmul.bf16.gmra.mxu0 %v1636
    %v1650 = vpop.f32.mrf.mxu0
    %v1651 = vadd.f32 0.0, %v1650
    %v1652 = vpop.f32.mrf.mxu0
    %1653 = vdwg.mxu0
    %1656 = vrot.lane.b32.xlu0 %v1546, 8
    %v1657 = vpop.permute.xlu0 %1656
    %1658 = vrot.lane.b32.xlu0 %v1567, 8
    %v1659 = vpop.permute.xlu0 %1658
    %1664 = vrot.lane.b32.xlu0 %v1588, 16
    %v1665 = vpop.permute.xlu0 %1664
    %1666 = vrot.lane.b32.xlu0 %v1609, 16
    %v1667 = vpop.permute.xlu0 %1666
    %1672 = vrot.lane.b32.xlu0 %v1630, 24
    %v1673 = vpop.permute.xlu0 %1672
    %1674 = vrot.lane.b32.xlu0 %v1651, 24
    %v1675 = vpop.permute.xlu0 %1674
    %v1678 = vsel %vm254, %v1504, %v1657
    %v1679 = vsel %vm254, %v1525, %v1659
    %v1680 = vsel %vm733, %v1678, %v1665
    %v1681 = vsel %vm733, %v1679, %v1667
    %v1682 = vsel %vm736, %v1680, %v1673
    %v1683 = vsel %vm736, %v1681, %v1675
    %v1684 = vpack.c.bf16 %v1683, %v1682
    %v1685 = vperm.slane %v1017, 0
    %v1690 = vunpack.c.l.b16 %v996
    %v1691 = vunpack.c.l.b16 %v997
    %v1692 = vunpack.c.l.b16 %v998
    %v1693 = vunpack.c.l.b16 %v999
    %v1694 = vpack.c.b16 %v1691, %v1690
    %v1695 = vpack.c.b16 %v1693, %v1692
    %v1699 = vsel %vm94, %v1684, 0
    %1701 = vmatpush.bf16.msra.mxu0 0
    %1702 = vmatpush.bf16.msra.mxu0 0
    %1703 = vmatpush.bf16.msra.mxu0 0
    %1704 = vmatpush.bf16.msra.mxu0 0
    %1705 = vmatpush.bf16.msra.mxu0 0
    %1706 = vmatpush.bf16.msra.mxu0 0
    %1707 = vmatpush.bf16.msra.mxu0 %v1695
    %1708 = vmatpush.bf16.msra.mxu0 %v1694
    %1709 = vmatmul.bf16.gmra.mxu0 %v1699
    %v1710 = vpop.f32.mrf.mxu0
    %v1711 = vadd.f32 %v1685, %v1710
    %v1712 = vpop.f32.mrf.mxu0
    %v1713 = vadd.f32 %v1685, %v1712
    %1714 = vdwg.mxu0
    %v1715 = vadd.f32 %v974, %v1711
    %v1716 = vadd.f32 %v975, %v1713
    %v1717 = vsel %vm94, %v1715, 0.0
    %1718 = vadd.xlane.f32.xlu0 %v1717
    %v1719 = vpop.xlane.xlu0 %1718
    %v1720 = vsel %vm94, %v1716, 0.0
    %1721 = vadd.xlane.f32.xlu0 %v1720
    %v1722 = vpop.xlane.xlu0 %1721
    %v1723 = vmul.f32 %v1719, %v784
    %v1724 = vmul.f32 %v1722, %v784
    %v1725 = vsub.f32 %v1715, %v1723
    %v1726 = vsub.f32 %v1716, %v1724
    %v1727 = vmul.f32 %v1725, %v1725
    %v1728 = vmul.f32 %v1726, %v1726
    %v1729 = vsel %vm94, %v1727, 0.0
    %1730 = vadd.xlane.f32.xlu0 %v1729
    %v1731 = vpop.xlane.xlu0 %1730
    %v1732 = vsel %vm94, %v1728, 0.0
    %1733 = vadd.xlane.f32.xlu0 %v1732
    %v1734 = vpop.xlane.xlu0 %1733
    %v1735 = vmul.f32 %v1731, %v784
    %v1736 = vmul.f32 %v1734, %v784
    %v1737 = vadd.f32 %v1735, 1e-12
    %v1738 = vadd.f32 %v1736, 1e-12
    %v1739 = vrsqrt.pop %v1737
    %v1740 = vmul.f32 %v1739, %v1737
    %v1741 = vmul.f32 %v1740, %v1739
    %v1742 = vmul.f32 0.5, %v1741
    %v1743 = vsub.f32 1.5, %v1742
    %v1744 = vmul.f32 %v1739, %v1743
    %vm1745 = vweird.f32 %v1737
    %vm1746 = vweird.f32 %v1739
    %vm1747 = vmor %vm1745, %vm1746
    %v1748 = vsel %vm1747, %v1739, %v1744
    %v1749 = vrsqrt.pop %v1738
    %v1750 = vmul.f32 %v1749, %v1738
    %v1751 = vmul.f32 %v1750, %v1749
    %v1752 = vmul.f32 0.5, %v1751
    %v1753 = vsub.f32 1.5, %v1752
    %v1754 = vmul.f32 %v1749, %v1753
    %vm1755 = vweird.f32 %v1738
    %vm1756 = vweird.f32 %v1749
    %vm1757 = vmor %vm1755, %vm1756
    %v1758 = vsel %vm1757, %v1749, %v1754
    %v1759 = vmul.f32 %v1725, %v1748
    %v1760 = vmul.f32 %v1726, %v1758
    %v1761 = vperm.slane %v1017, 1
    %v1762 = vmul.f32 %v1759, %v1761
    %v1763 = vmul.f32 %v1760, %v1761
    %v1764 = vperm.slane %v1017, 2
    %v1765 = vadd.f32 %v1762, %v1764
    %v1766 = vadd.f32 %v1763, %v1764
    %v1767 = vpack.c.bf16 %v1766, %v1765
    %v1769 = vperm.slane %v1015, 0
    %v1775 = vunpack.c.l.b16 %v1001
    %v1776 = vunpack.c.l.b16 %v1002
    %v1777 = vunpack.c.l.b16 %v1003
    %v1778 = vunpack.c.l.b16 %v1004
    %v1779 = vpack.c.b16 %v1776, %v1775
    %v1780 = vpack.c.b16 %v1778, %v1777
    %v1784 = vsel %vm94, %v1767, 0
    %1786 = vmatpush.bf16.msra.mxu0 0
    %1787 = vmatpush.bf16.msra.mxu0 0
    %1788 = vmatpush.bf16.msra.mxu0 0
    %1789 = vmatpush.bf16.msra.mxu0 0
    %1790 = vmatpush.bf16.msra.mxu0 0
    %1791 = vmatpush.bf16.msra.mxu0 0
    %1792 = vmatpush.bf16.msra.mxu0 %v1780
    %1793 = vmatpush.bf16.msra.mxu0 %v1779
    %1794 = vmatmul.bf16.gmra.mxu0 %v1784
    %v1795 = vpop.f32.mrf.mxu0
    %v1796 = vadd.f32 %v1769, %v1795
    %v1797 = vpop.f32.mrf.mxu0
    %v1798 = vadd.f32 %v1769, %v1797
    %1799 = vdwg.mxu0
    %v1800 = vmul.f32 %v1796, 0.5
    %v1801 = vmul.f32 %v1798, 0.5
    %v1802 = vmul.f32 %v1796, 0.044715
    %v1803 = vmul.f32 %v1798, 0.044715
    %v1804 = vmul.f32 %v1802, %v1796
    %v1805 = vmul.f32 %v1803, %v1798
    %v1806 = vmul.f32 %v1804, %v1796
    %v1807 = vmul.f32 %v1805, %v1798
    %v1808 = vadd.f32 %v1796, %v1806
    %v1809 = vadd.f32 %v1798, %v1807
    %v1810 = vmul.f32 %v1808, 0.7978846
    %v1811 = vmul.f32 %v1809, 0.7978846
    %v1812 = vtanh.pop %v1810
    %v1813 = vtanh.pop %v1811
    %v1814 = vadd.f32 %v1812, 1.0
    %v1815 = vadd.f32 %v1813, 1.0
    %v1816 = vmul.f32 %v1800, %v1814
    %v1817 = vmul.f32 %v1801, %v1815
    %v1818 = vpack.c.bf16 %v1817, %v1816
    %v1819 = vperm.slane %v1017, 3
    %v1828 = vunpack.c.l.b16 %v1006
    %v1829 = vunpack.c.l.b16 %v1007
    %v1830 = vunpack.c.l.b16 %v1008
    %v1831 = vunpack.c.l.b16 %v1009
    %v1832 = vunpack.c.l.b16 %v1010
    %v1833 = vunpack.c.l.b16 %v1011
    %v1834 = vunpack.c.l.b16 %v1012
    %v1835 = vunpack.c.l.b16 %v1013
    %v1836 = vpack.c.b16 %v1829, %v1828
    %v1837 = vpack.c.b16 %v1831, %v1830
    %v1838 = vpack.c.b16 %v1833, %v1832
    %v1839 = vpack.c.b16 %v1835, %v1834
    %v1845 = vsel %vm906, %v1818, 0
    %1847 = vmatpush.bf16.msra.mxu0 0
    %1848 = vmatpush.bf16.msra.mxu0 0
    %1849 = vmatpush.bf16.msra.mxu0 0
    %1850 = vmatpush.bf16.msra.mxu0 0
    %1851 = vmatpush.bf16.msra.mxu0 %v1839
    %1852 = vmatpush.bf16.msra.mxu0 %v1838
    %1853 = vmatpush.bf16.msra.mxu0 %v1837
    %1854 = vmatpush.bf16.msra.mxu0 %v1836
    %1855 = vmatmul.bf16.gmra.mxu0 %v1845
    %v1856 = vpop.f32.mrf.mxu0
    %v1857 = vadd.f32 %v1819, %v1856
    %v1858 = vpop.f32.mrf.mxu0
    %v1859 = vadd.f32 %v1819, %v1858
    %1860 = vdwg.mxu0
    %v1861 = vadd.f32 %v1857, %v1765
    %v1862 = vadd.f32 %v1859, %v1766
    %v1863 = vsel %vm94, %v1861, 0.0
    %1864 = vadd.xlane.f32.xlu0 %v1863
    %v1865 = vpop.xlane.xlu0 %1864
    %v1866 = vsel %vm94, %v1862, 0.0
    %1867 = vadd.xlane.f32.xlu0 %v1866
    %v1868 = vpop.xlane.xlu0 %1867
    %v1869 = vmul.f32 %v1865, %v784
    %v1870 = vmul.f32 %v1868, %v784
    %v1871 = vsub.f32 %v1861, %v1869
    %v1872 = vsub.f32 %v1862, %v1870
    %v1873 = vmul.f32 %v1871, %v1871
    %v1874 = vmul.f32 %v1872, %v1872
    %v1875 = vsel %vm94, %v1873, 0.0
    %1876 = vadd.xlane.f32.xlu0 %v1875
    %v1877 = vpop.xlane.xlu0 %1876
    %v1878 = vsel %vm94, %v1874, 0.0
    %1879 = vadd.xlane.f32.xlu0 %v1878
    %v1880 = vpop.xlane.xlu0 %1879
    %v1881 = vmul.f32 %v1877, %v784
    %v1882 = vmul.f32 %v1880, %v784
    %v1883 = vadd.f32 %v1881, 1e-12
    %v1884 = vadd.f32 %v1882, 1e-12
    %v1885 = vrsqrt.pop %v1883
    %v1886 = vmul.f32 %v1885, %v1883
    %v1887 = vmul.f32 %v1886, %v1885
    %v1888 = vmul.f32 0.5, %v1887
    %v1889 = vsub.f32 1.5, %v1888
    %v1890 = vmul.f32 %v1885, %v1889
    %vm1891 = vweird.f32 %v1883
    %vm1892 = vweird.f32 %v1885
    %vm1893 = vmor %vm1891, %vm1892
    %v1894 = vsel %vm1893, %v1885, %v1890
    %v1895 = vrsqrt.pop %v1884
    %v1896 = vmul.f32 %v1895, %v1884
    %v1897 = vmul.f32 %v1896, %v1895
    %v1898 = vmul.f32 0.5, %v1897
    %v1899 = vsub.f32 1.5, %v1898
    %v1900 = vmul.f32 %v1895, %v1899
    %vm1901 = vweird.f32 %v1884
    %vm1902 = vweird.f32 %v1895
    %vm1903 = vmor %vm1901, %vm1902
    %v1904 = vsel %vm1903, %v1895, %v1900
    %v1905 = vmul.f32 %v1871, %v1894
    %v1906 = vmul.f32 %v1872, %v1904
    %v1907 = vperm.slane %v1017, 4
    %v1908 = vmul.f32 %v1905, %v1907
    %v1909 = vmul.f32 %v1906, %v1907
    %v1910 = vperm.slane %v1017, 5
    %v1911 = vadd.f32 %v1908, %v1910
    %v1912 = vadd.f32 %v1909, %v1910
    %1913 = vst.msk [vmem:[#allocation2] sm:$0xff] %vm94, %v1911
    %1914 = vst.msk [vmem:[#allocation2 + $0x8] sm:$0xff] %vm94, %v1912
    // Predicated region
    $region34: #{tpu_custom_call.1} parent=1 // pred_check
      _
    $region35: #{tpu_custom_call.1} parent=1 // pred_check_branch
      %1916 = sbr.rel (0) target = $region37
    $region36: #{tpu_custom_call.1} parent=1 // pred_region
      %1918 = vsyncadd [#allocation3], 0
      %s1919 = sshll.u32 [#allocation2], 4
      %s1920 = int_to_ptr.vmem [resolvable:$true] %s1919
      %s1921 = sshll.u32 %s8, 4
      %s1922 = int_to_ptr.hbm [resolvable:$true] %s1921
      %1927 = dma.vmem_to_hbm [thread:$0]  %s1920, 256, %s1922, [#allocation3], 128, 128, 8
    $region37: #{tpu_custom_call.1} parent=1 // pred_fallthru
      _
    // Predicated region
    $region38: #{tpu_custom_call.1} parent=1 // pred_check
      _
    $region39: #{tpu_custom_call.1} parent=1 // pred_check_branch
      %1929 = sbr.rel (0) target = $region41
    $region40: #{tpu_custom_call.1} parent=1 // pred_region
      %1931 = dma.done [#allocation3], 256
    $region41: #{tpu_custom_call.1} parent=1 // pred_fallthru
      _
    %1932 = vsyncpa [#allocation3], 1

</llo_original>
